<compile_context>
chip_gen: v7x
topology: tpu7x:2x2x1
jax: 0.10.0
libtpu: 0.0.40
codegen_flags: <defaults>
</compile_context>

<pallas_src>
import numpy as np
import jax
import jax.numpy as jnp
from jax import lax
from jax.experimental import pallas as pl
from jax.experimental.pallas import tpu as pltpu

EPS = 1e-5  # BatchNorm1d default eps


def _make_kernel(T, T_out, B, D, H):
    def kernel(x_ref, mask_ref, gamma_ref, beta_ref, wih_ref, whh_ref, b_ref,
               outh_ref, outc_ref):
        # ---- BatchNorm1d (training mode): per-channel stats over all T*B rows
        # (includes padded positions, exactly like the PyTorch forward which
        # normalizes the padded tensor before pack_padded_sequence). ----
        x = x_ref[...]                                          # (T*B, D)
        mean = jnp.mean(x, axis=0, keepdims=True)               # (1, D)
        var = jnp.mean((x - mean) ** 2, axis=0, keepdims=True)  # (1, D)
        inv = lax.rsqrt(var + EPS)                              # (1, D)
        scale = inv * gamma_ref[...]                            # (1, D)
        shift = beta_ref[...] - mean * scale                    # (1, D)

        # ---- fold BN into the input projection (done once, in-kernel,
        # because the stats are data-dependent) ----
        wih = wih_ref[...]                                      # (D, 4H)
        wih_eff = wih * jnp.transpose(scale)                    # row d scaled
        b_eff = (jnp.dot(shift, wih, preferred_element_type=jnp.float32)
                 + b_ref[...])                                  # (1, 4H)

        # one lane-dense GEMM for every timestep's input contribution
        gx = jnp.dot(x, wih_eff,
                     preferred_element_type=jnp.float32) + b_eff  # (T*B, 4H)

        whh = whh_ref[...]                                      # (H, 4H)
        mask = mask_ref[...]                                    # (T_out*B, H)

        # ---- recurrence (fully unrolled; T_out is a small static int) ----
        h = jnp.zeros((B, H), jnp.float32)
        c = jnp.zeros((B, H), jnp.float32)
        outs = []
        for t in range(T_out):
            gates = gx[t * B:(t + 1) * B, :] + jnp.dot(
                h, whh, preferred_element_type=jnp.float32)     # (B, 4H)
            i = jax.nn.sigmoid(gates[:, 0:H])
            f = jax.nn.sigmoid(gates[:, H:2 * H])
            g = jnp.tanh(gates[:, 2 * H:3 * H])
            o = jax.nn.sigmoid(gates[:, 3 * H:4 * H])
            c_new = f * c + i * g
            h_new = o * jnp.tanh(c_new)
            m = mask[t * B:(t + 1) * B, :]                      # (B, H) {0,1}
            # freeze state past each sequence's length; zero-pad the output
            c = c + m * (c_new - c)
            h = h + m * (h_new - h)
            outs.append(m * h_new)

        # single lane-dense store: (B, T_out*H)
        outh_ref[...] = jnp.concatenate(outs, axis=1)
        outc_ref[...] = c

    return kernel


def vision_subnet_forward(x_btd, lengths, params):
    """x_btd: (B, T, D) float32 batch-first (same as the PyTorch module input).
    lengths: host-side int sequence lengths (like pack_padded_sequence).
    Returns (padded_h (T_out, B, H), final_c (B, H))."""
    B, T, D = x_btd.shape
    H = params["w_hh"].shape[1]
    lengths_np = np.asarray(lengths)
    T_out = int(lengths_np.max())          # pad_packed_sequence output length

    # time-major flattened rows: row r = t*B + b
    x_flat = jnp.transpose(x_btd, (1, 0, 2)).reshape(T * B, D).astype(jnp.float32)

    # precomputed {0,1} mask, pre-broadcast over H: (T_out*B, H)
    mask_np = (np.arange(T_out)[:, None] < lengths_np[None, :]).astype(np.float32)
    mask_flat = jnp.asarray(
        np.repeat(mask_np.reshape(T_out * B, 1), H, axis=1), dtype=jnp.float32)

    wih = jnp.transpose(params["w_ih"]).astype(jnp.float32)       # (D, 4H)
    whh = jnp.transpose(params["w_hh"]).astype(jnp.float32)       # (H, 4H)
    bias = (params["b_ih"] + params["b_hh"]).reshape(1, 4 * H).astype(jnp.float32)
    gamma = params["gamma"].reshape(1, D).astype(jnp.float32)
    beta = params["beta"].reshape(1, D).astype(jnp.float32)

    vspec = pl.BlockSpec(memory_space=pltpu.MemorySpace.VMEM)
    outh2d, final_c = pl.pallas_call(
        _make_kernel(T, T_out, B, D, H),
        out_shape=(jax.ShapeDtypeStruct((B, T_out * H), jnp.float32),
                   jax.ShapeDtypeStruct((B, H), jnp.float32)),
        in_specs=[vspec] * 7,
        out_specs=(vspec, vspec),
    )(x_flat, mask_flat, gamma, beta, wih, whh, bias)

    # back to pad_packed_sequence default layout (T_out, B, H)
    padded_h = jnp.transpose(outh2d.reshape(B, T_out, H), (1, 0, 2))
    return padded_h, final_c


def reference_forward(x_btd, lengths, params):
    """Pure-numpy reference mirroring the PyTorch semantics."""
    B, T, D = x_btd.shape
    H = params["w_hh"].shape[1]
    lengths = np.asarray(lengths)
    T_out = int(lengths.max())
    x = np.asarray(x_btd, dtype=np.float64)
    mean = x.mean(axis=(0, 1))
    var = x.var(axis=(0, 1))
    xn = (x - mean) / np.sqrt(var + EPS) * np.asarray(params["gamma"], np.float64) \
         + np.asarray(params["beta"], np.float64)
    wih = np.asarray(params["w_ih"], np.float64)   # (4H, D)
    whh = np.asarray(params["w_hh"], np.float64)   # (4H, H)
    b = np.asarray(params["b_ih"], np.float64) + np.asarray(params["b_hh"], np.float64)
    h = np.zeros((B, H)); c = np.zeros((B, H))
    out = np.zeros((T_out, B, H))
    sig = lambda z: 1.0 / (1.0 + np.exp(-z))
    for t in range(T_out):
        gates = xn[:, t, :] @ wih.T + h @ whh.T + b
        i = sig(gates[:, :H]); f = sig(gates[:, H:2 * H])
        g = np.tanh(gates[:, 2 * H:3 * H]); o = sig(gates[:, 3 * H:])
        c_new = f * c + i * g
        h_new = o * np.tanh(c_new)
        m = (t < lengths)[:, None]
        c = np.where(m, c_new, c); h = np.where(m, h_new, h)
        out[t] = np.where(m, h_new, 0.0)
    return out, c


if __name__ == "__main__":
    # args.orig_d_v = 16, args.vision_hidden = 32
    B, T, D, H = 2, 8, 16, 32
    key = jax.random.PRNGKey(0)
    k = 1.0 / np.sqrt(H)
    ks = jax.random.split(key, 7)
    params = {
        "w_ih": jax.random.uniform(ks[0], (4 * H, D), jnp.float32, -k, k),
        "w_hh": jax.random.uniform(ks[1], (4 * H, H), jnp.float32, -k, k),
        "b_ih": jax.random.uniform(ks[2], (4 * H,), jnp.float32, -k, k),
        "b_hh": jax.random.uniform(ks[3], (4 * H,), jnp.float32, -k, k),
        "gamma": jax.random.uniform(ks[4], (D,), jnp.float32, 0.8, 1.2),
        "beta": jax.random.uniform(ks[5], (D,), jnp.float32, -0.1, 0.1),
    }
    x = jax.random.normal(ks[6], (B, T, D), jnp.float32)
    lengths = np.array([8, 5], dtype=np.int32)   # variable lengths (packed seq)

    padded_h, final_c = vision_subnet_forward(x, lengths, params)
    jax.block_until_ready((padded_h, final_c))

    ref_h, ref_c = reference_forward(np.asarray(x), lengths, params)
    assert padded_h.shape == (int(lengths.max()), B, H)
    assert final_c.shape == (B, H)
    np.testing.assert_allclose(np.asarray(padded_h), ref_h, atol=3e-4, rtol=3e-4)
    np.testing.assert_allclose(np.asarray(final_c), ref_c, atol=3e-4, rtol=3e-4)

    print("KERNEL_OK")
</pallas_src>

<mosaic_0001>
module attributes {stable_mosaic.version = 11 : i64} {
  func.func @kernel(%arg0: memref<16x16xf32, #tpu.memory_space<vmem>>, %arg1: memref<16x32xf32, #tpu.memory_space<vmem>>, %arg2: memref<1x16xf32, #tpu.memory_space<vmem>>, %arg3: memref<1x16xf32, #tpu.memory_space<vmem>>, %arg4: memref<16x128xf32, #tpu.memory_space<vmem>>, %arg5: memref<32x128xf32, #tpu.memory_space<vmem>>, %arg6: memref<1x128xf32, #tpu.memory_space<vmem>>, %arg7: memref<2x256xf32, #tpu.memory_space<vmem>>, %arg8: memref<2x32xf32, #tpu.memory_space<vmem>>) attributes {dimension_semantics = [], scalar_prefetch = 0 : i64, scratch_operands = 0 : i64, tpu.core_type = #tpu.core_type<tc>} {
    %c0 = arith.constant 0 : index
    %c0_0 = arith.constant 0 : index
    %0 = vector.load %arg0[%c0, %c0_0] : memref<16x16xf32, #tpu.memory_space<vmem>>, vector<16x16xf32>
    %cst = arith.constant dense<0.000000e+00> : vector<16xf32>
    %1 = vector.multi_reduction <add>, %0, %cst [0] : vector<16x16xf32> to vector<16xf32>
    %2 = vector.shape_cast %1 : vector<16xf32> to vector<1x16xf32>
    %cst_1 = arith.constant 1.600000e+01 : f32
    %3 = vector.broadcast %cst_1 : f32 to vector<1x16xf32>
    %4 = arith.divf %2, %3 : vector<1x16xf32>
    %5 = vector.broadcast %4 : vector<1x16xf32> to vector<16x16xf32>
    %6 = arith.subf %0, %5 : vector<16x16xf32>
    %7 = arith.mulf %6, %6 : vector<16x16xf32>
    %cst_2 = arith.constant dense<0.000000e+00> : vector<16xf32>
    %8 = vector.multi_reduction <add>, %7, %cst_2 [0] : vector<16x16xf32> to vector<16xf32>
    %9 = vector.shape_cast %8 : vector<16xf32> to vector<1x16xf32>
    %cst_3 = arith.constant 1.600000e+01 : f32
    %10 = vector.broadcast %cst_3 : f32 to vector<1x16xf32>
    %11 = arith.divf %9, %10 : vector<1x16xf32>
    %cst_4 = arith.constant 9.99999974E-6 : f32
    %12 = vector.broadcast %cst_4 : f32 to vector<1x16xf32>
    %13 = arith.addf %11, %12 : vector<1x16xf32>
    %14 = math.rsqrt %13 : vector<1x16xf32>
    %c0_5 = arith.constant 0 : index
    %c0_6 = arith.constant 0 : index
    %15 = vector.load %arg2[%c0_5, %c0_6] : memref<1x16xf32, #tpu.memory_space<vmem>>, vector<1x16xf32>
    %16 = arith.mulf %14, %15 : vector<1x16xf32>
    %c0_7 = arith.constant 0 : index
    %c0_8 = arith.constant 0 : index
    %17 = vector.load %arg3[%c0_7, %c0_8] : memref<1x16xf32, #tpu.memory_space<vmem>>, vector<1x16xf32>
    %18 = arith.mulf %4, %16 : vector<1x16xf32>
    %19 = arith.subf %17, %18 : vector<1x16xf32>
    %c0_9 = arith.constant 0 : index
    %c0_10 = arith.constant 0 : index
    %20 = vector.load %arg4[%c0_9, %c0_10] : memref<16x128xf32, #tpu.memory_space<vmem>>, vector<16x128xf32>
    %21 = tpu.transpose %16, [1, 0] : vector<1x16xf32> -> vector<16x1xf32>
    %22 = vector.broadcast %21 : vector<16x1xf32> to vector<16x128xf32>
    %23 = arith.mulf %20, %22 : vector<16x128xf32>
    %cst_11 = arith.constant dense<0.000000e+00> : vector<1x128xf32>
    %24 = tpu.matmul %19, %20, %cst_11 {dimension_numbers = #tpu.dot_dimension_numbers<[1], [0], [0], [1], [0, 0, 1, 1], [], []>} : vector<1x16xf32>, vector<16x128xf32>, vector<1x128xf32> -> vector<1x128xf32>
    %c0_12 = arith.constant 0 : index
    %c0_13 = arith.constant 0 : index
    %25 = vector.load %arg6[%c0_12, %c0_13] : memref<1x128xf32, #tpu.memory_space<vmem>>, vector<1x128xf32>
    %26 = arith.addf %24, %25 : vector<1x128xf32>
    %cst_14 = arith.constant dense<0.000000e+00> : vector<16x128xf32>
    %27 = tpu.matmul %0, %23, %cst_14 {dimension_numbers = #tpu.dot_dimension_numbers<[1], [0], [0], [1], [0, 0, 1, 1], [], []>} : vector<16x16xf32>, vector<16x128xf32>, vector<16x128xf32> -> vector<16x128xf32>
    %28 = vector.broadcast %26 : vector<1x128xf32> to vector<16x128xf32>
    %29 = arith.addf %27, %28 : vector<16x128xf32>
    %c0_15 = arith.constant 0 : index
    %c0_16 = arith.constant 0 : index
    %30 = vector.load %arg5[%c0_15, %c0_16] : memref<32x128xf32, #tpu.memory_space<vmem>>, vector<32x128xf32>
    %c0_17 = arith.constant 0 : index
    %c0_18 = arith.constant 0 : index
    %31 = vector.load %arg1[%c0_17, %c0_18] : memref<16x32xf32, #tpu.memory_space<vmem>>, vector<16x32xf32>
    %cst_19 = arith.constant 0.000000e+00 : f32
    %32 = vector.broadcast %cst_19 : f32 to vector<2x32xf32>
    %cst_20 = arith.constant 0.000000e+00 : f32
    %33 = vector.broadcast %cst_20 : f32 to vector<2x32xf32>
    %34 = vector.extract_strided_slice %29 {offsets = [0, 0], sizes = [2, 128], strides = [1, 1]} : vector<16x128xf32> to vector<2x128xf32>
    %cst_21 = arith.constant dense<0.000000e+00> : vector<2x128xf32>
    %35 = tpu.matmul %32, %30, %cst_21 {dimension_numbers = #tpu.dot_dimension_numbers<[1], [0], [0], [1], [0, 0, 1, 1], [], []>} : vector<2x32xf32>, vector<32x128xf32>, vector<2x128xf32> -> vector<2x128xf32>
    %36 = arith.addf %34, %35 : vector<2x128xf32>
    %37 = vector.extract_strided_slice %36 {offsets = [0, 0], sizes = [2, 32], strides = [1, 1]} : vector<2x128xf32> to vector<2x32xf32>
    %38 = arith.negf %37 : vector<2x32xf32>
    %39 = math.exp %38 : vector<2x32xf32>
    %cst_22 = arith.constant 1.000000e+00 : f32
    %40 = vector.broadcast %cst_22 : f32 to vector<2x32xf32>
    %41 = arith.addf %40, %39 : vector<2x32xf32>
    %42 = arith.divf %40, %41 : vector<2x32xf32>
    %43 = vector.extract_strided_slice %36 {offsets = [0, 32], sizes = [2, 32], strides = [1, 1]} : vector<2x128xf32> to vector<2x32xf32>
    %44 = arith.negf %43 : vector<2x32xf32>
    %45 = math.exp %44 : vector<2x32xf32>
    %cst_23 = arith.constant 1.000000e+00 : f32
    %46 = vector.broadcast %cst_23 : f32 to vector<2x32xf32>
    %47 = arith.addf %46, %45 : vector<2x32xf32>
    %48 = arith.divf %46, %47 : vector<2x32xf32>
    %49 = vector.extract_strided_slice %36 {offsets = [0, 64], sizes = [2, 32], strides = [1, 1]} : vector<2x128xf32> to vector<2x32xf32>
    %50 = math.tanh %49 : vector<2x32xf32>
    %51 = vector.extract_strided_slice %36 {offsets = [0, 96], sizes = [2, 32], strides = [1, 1]} : vector<2x128xf32> to vector<2x32xf32>
    %52 = arith.negf %51 : vector<2x32xf32>
    %53 = math.exp %52 : vector<2x32xf32>
    %cst_24 = arith.constant 1.000000e+00 : f32
    %54 = vector.broadcast %cst_24 : f32 to vector<2x32xf32>
    %55 = arith.addf %54, %53 : vector<2x32xf32>
    %56 = arith.divf %54, %55 : vector<2x32xf32>
    %57 = arith.mulf %48, %33 : vector<2x32xf32>
    %58 = arith.mulf %42, %50 : vector<2x32xf32>
    %59 = arith.addf %57, %58 : vector<2x32xf32>
    %60 = math.tanh %59 : vector<2x32xf32>
    %61 = arith.mulf %56, %60 : vector<2x32xf32>
    %62 = vector.extract_strided_slice %31 {offsets = [0, 0], sizes = [2, 32], strides = [1, 1]} : vector<16x32xf32> to vector<2x32xf32>
    %63 = arith.subf %59, %33 : vector<2x32xf32>
    %64 = arith.mulf %62, %63 : vector<2x32xf32>
    %65 = arith.addf %33, %64 : vector<2x32xf32>
    %66 = arith.subf %61, %32 : vector<2x32xf32>
    %67 = arith.mulf %62, %66 : vector<2x32xf32>
    %68 = arith.addf %32, %67 : vector<2x32xf32>
    %69 = arith.mulf %62, %61 : vector<2x32xf32>
    %70 = vector.extract_strided_slice %29 {offsets = [2, 0], sizes = [2, 128], strides = [1, 1]} : vector<16x128xf32> to vector<2x128xf32>
    %cst_25 = arith.constant dense<0.000000e+00> : vector<2x128xf32>
    %71 = tpu.matmul %68, %30, %cst_25 {dimension_numbers = #tpu.dot_dimension_numbers<[1], [0], [0], [1], [0, 0, 1, 1], [], []>} : vector<2x32xf32>, vector<32x128xf32>, vector<2x128xf32> -> vector<2x128xf32>
    %72 = arith.addf %70, %71 : vector<2x128xf32>
    %73 = vector.extract_strided_slice %72 {offsets = [0, 0], sizes = [2, 32], strides = [1, 1]} : vector<2x128xf32> to vector<2x32xf32>
    %74 = arith.negf %73 : vector<2x32xf32>
    %75 = math.exp %74 : vector<2x32xf32>
    %cst_26 = arith.constant 1.000000e+00 : f32
    %76 = vector.broadcast %cst_26 : f32 to vector<2x32xf32>
    %77 = arith.addf %76, %75 : vector<2x32xf32>
    %78 = arith.divf %76, %77 : vector<2x32xf32>
    %79 = vector.extract_strided_slice %72 {offsets = [0, 32], sizes = [2, 32], strides = [1, 1]} : vector<2x128xf32> to vector<2x32xf32>
    %80 = arith.negf %79 : vector<2x32xf32>
    %81 = math.exp %80 : vector<2x32xf32>
    %cst_27 = arith.constant 1.000000e+00 : f32
    %82 = vector.broadcast %cst_27 : f32 to vector<2x32xf32>
    %83 = arith.addf %82, %81 : vector<2x32xf32>
    %84 = arith.divf %82, %83 : vector<2x32xf32>
    %85 = vector.extract_strided_slice %72 {offsets = [0, 64], sizes = [2, 32], strides = [1, 1]} : vector<2x128xf32> to vector<2x32xf32>
    %86 = math.tanh %85 : vector<2x32xf32>
    %87 = vector.extract_strided_slice %72 {offsets = [0, 96], sizes = [2, 32], strides = [1, 1]} : vector<2x128xf32> to vector<2x32xf32>
    %88 = arith.negf %87 : vector<2x32xf32>
    %89 = math.exp %88 : vector<2x32xf32>
    %cst_28 = arith.constant 1.000000e+00 : f32
    %90 = vector.broadcast %cst_28 : f32 to vector<2x32xf32>
    %91 = arith.addf %90, %89 : vector<2x32xf32>
    %92 = arith.divf %90, %91 : vector<2x32xf32>
    %93 = arith.mulf %84, %65 : vector<2x32xf32>
    %94 = arith.mulf %78, %86 : vector<2x32xf32>
    %95 = arith.addf %93, %94 : vector<2x32xf32>
    %96 = math.tanh %95 : vector<2x32xf32>
    %97 = arith.mulf %92, %96 : vector<2x32xf32>
    %98 = vector.extract_strided_slice %31 {offsets = [2, 0], sizes = [2, 32], strides = [1, 1]} : vector<16x32xf32> to vector<2x32xf32>
    %99 = arith.subf %95, %65 : vector<2x32xf32>
    %100 = arith.mulf %98, %99 : vector<2x32xf32>
    %101 = arith.addf %65, %100 : vector<2x32xf32>
    %102 = arith.subf %97, %68 : vector<2x32xf32>
    %103 = arith.mulf %98, %102 : vector<2x32xf32>
    %104 = arith.addf %68, %103 : vector<2x32xf32>
    %105 = arith.mulf %98, %97 : vector<2x32xf32>
    %106 = vector.extract_strided_slice %29 {offsets = [4, 0], sizes = [2, 128], strides = [1, 1]} : vector<16x128xf32> to vector<2x128xf32>
    %cst_29 = arith.constant dense<0.000000e+00> : vector<2x128xf32>
    %107 = tpu.matmul %104, %30, %cst_29 {dimension_numbers = #tpu.dot_dimension_numbers<[1], [0], [0], [1], [0, 0, 1, 1], [], []>} : vector<2x32xf32>, vector<32x128xf32>, vector<2x128xf32> -> vector<2x128xf32>
    %108 = arith.addf %106, %107 : vector<2x128xf32>
    %109 = vector.extract_strided_slice %108 {offsets = [0, 0], sizes = [2, 32], strides = [1, 1]} : vector<2x128xf32> to vector<2x32xf32>
    %110 = arith.negf %109 : vector<2x32xf32>
    %111 = math.exp %110 : vector<2x32xf32>
    %cst_30 = arith.constant 1.000000e+00 : f32
    %112 = vector.broadcast %cst_30 : f32 to vector<2x32xf32>
    %113 = arith.addf %112, %111 : vector<2x32xf32>
    %114 = arith.divf %112, %113 : vector<2x32xf32>
    %115 = vector.extract_strided_slice %108 {offsets = [0, 32], sizes = [2, 32], strides = [1, 1]} : vector<2x128xf32> to vector<2x32xf32>
    %116 = arith.negf %115 : vector<2x32xf32>
    %117 = math.exp %116 : vector<2x32xf32>
    %cst_31 = arith.constant 1.000000e+00 : f32
    %118 = vector.broadcast %cst_31 : f32 to vector<2x32xf32>
    %119 = arith.addf %118, %117 : vector<2x32xf32>
    %120 = arith.divf %118, %119 : vector<2x32xf32>
    %121 = vector.extract_strided_slice %108 {offsets = [0, 64], sizes = [2, 32], strides = [1, 1]} : vector<2x128xf32> to vector<2x32xf32>
    %122 = math.tanh %121 : vector<2x32xf32>
    %123 = vector.extract_strided_slice %108 {offsets = [0, 96], sizes = [2, 32], strides = [1, 1]} : vector<2x128xf32> to vector<2x32xf32>
    %124 = arith.negf %123 : vector<2x32xf32>
    %125 = math.exp %124 : vector<2x32xf32>
    %cst_32 = arith.constant 1.000000e+00 : f32
    %126 = vector.broadcast %cst_32 : f32 to vector<2x32xf32>
    %127 = arith.addf %126, %125 : vector<2x32xf32>
    %128 = arith.divf %126, %127 : vector<2x32xf32>
    %129 = arith.mulf %120, %101 : vector<2x32xf32>
    %130 = arith.mulf %114, %122 : vector<2x32xf32>
    %131 = arith.addf %129, %130 : vector<2x32xf32>
    %132 = math.tanh %131 : vector<2x32xf32>
    %133 = arith.mulf %128, %132 : vector<2x32xf32>
    %134 = vector.extract_strided_slice %31 {offsets = [4, 0], sizes = [2, 32], strides = [1, 1]} : vector<16x32xf32> to vector<2x32xf32>
    %135 = arith.subf %131, %101 : vector<2x32xf32>
    %136 = arith.mulf %134, %135 : vector<2x32xf32>
    %137 = arith.addf %101, %136 : vector<2x32xf32>
    %138 = arith.subf %133, %104 : vector<2x32xf32>
    %139 = arith.mulf %134, %138 : vector<2x32xf32>
    %140 = arith.addf %104, %139 : vector<2x32xf32>
    %141 = arith.mulf %134, %133 : vector<2x32xf32>
    %142 = vector.extract_strided_slice %29 {offsets = [6, 0], sizes = [2, 128], strides = [1, 1]} : vector<16x128xf32> to vector<2x128xf32>
    %cst_33 = arith.constant dense<0.000000e+00> : vector<2x128xf32>
    %143 = tpu.matmul %140, %30, %cst_33 {dimension_numbers = #tpu.dot_dimension_numbers<[1], [0], [0], [1], [0, 0, 1, 1], [], []>} : vector<2x32xf32>, vector<32x128xf32>, vector<2x128xf32> -> vector<2x128xf32>
    %144 = arith.addf %142, %143 : vector<2x128xf32>
    %145 = vector.extract_strided_slice %144 {offsets = [0, 0], sizes = [2, 32], strides = [1, 1]} : vector<2x128xf32> to vector<2x32xf32>
    %146 = arith.negf %145 : vector<2x32xf32>
    %147 = math.exp %146 : vector<2x32xf32>
    %cst_34 = arith.constant 1.000000e+00 : f32
    %148 = vector.broadcast %cst_34 : f32 to vector<2x32xf32>
    %149 = arith.addf %148, %147 : vector<2x32xf32>
    %150 = arith.divf %148, %149 : vector<2x32xf32>
    %151 = vector.extract_strided_slice %144 {offsets = [0, 32], sizes = [2, 32], strides = [1, 1]} : vector<2x128xf32> to vector<2x32xf32>
    %152 = arith.negf %151 : vector<2x32xf32>
    %153 = math.exp %152 : vector<2x32xf32>
    %cst_35 = arith.constant 1.000000e+00 : f32
    %154 = vector.broadcast %cst_35 : f32 to vector<2x32xf32>
    %155 = arith.addf %154, %153 : vector<2x32xf32>
    %156 = arith.divf %154, %155 : vector<2x32xf32>
    %157 = vector.extract_strided_slice %144 {offsets = [0, 64], sizes = [2, 32], strides = [1, 1]} : vector<2x128xf32> to vector<2x32xf32>
    %158 = math.tanh %157 : vector<2x32xf32>
    %159 = vector.extract_strided_slice %144 {offsets = [0, 96], sizes = [2, 32], strides = [1, 1]} : vector<2x128xf32> to vector<2x32xf32>
    %160 = arith.negf %159 : vector<2x32xf32>
    %161 = math.exp %160 : vector<2x32xf32>
    %cst_36 = arith.constant 1.000000e+00 : f32
    %162 = vector.broadcast %cst_36 : f32 to vector<2x32xf32>
    %163 = arith.addf %162, %161 : vector<2x32xf32>
    %164 = arith.divf %162, %163 : vector<2x32xf32>
    %165 = arith.mulf %156, %137 : vector<2x32xf32>
    %166 = arith.mulf %150, %158 : vector<2x32xf32>
    %167 = arith.addf %165, %166 : vector<2x32xf32>
    %168 = math.tanh %167 : vector<2x32xf32>
    %169 = arith.mulf %164, %168 : vector<2x32xf32>
    %170 = vector.extract_strided_slice %31 {offsets = [6, 0], sizes = [2, 32], strides = [1, 1]} : vector<16x32xf32> to vector<2x32xf32>
    %171 = arith.subf %167, %137 : vector<2x32xf32>
    %172 = arith.mulf %170, %171 : vector<2x32xf32>
    %173 = arith.addf %137, %172 : vector<2x32xf32>
    %174 = arith.subf %169, %140 : vector<2x32xf32>
    %175 = arith.mulf %170, %174 : vector<2x32xf32>
    %176 = arith.addf %140, %175 : vector<2x32xf32>
    %177 = arith.mulf %170, %169 : vector<2x32xf32>
    %178 = vector.extract_strided_slice %29 {offsets = [8, 0], sizes = [2, 128], strides = [1, 1]} : vector<16x128xf32> to vector<2x128xf32>
    %cst_37 = arith.constant dense<0.000000e+00> : vector<2x128xf32>
    %179 = tpu.matmul %176, %30, %cst_37 {dimension_numbers = #tpu.dot_dimension_numbers<[1], [0], [0], [1], [0, 0, 1, 1], [], []>} : vector<2x32xf32>, vector<32x128xf32>, vector<2x128xf32> -> vector<2x128xf32>
    %180 = arith.addf %178, %179 : vector<2x128xf32>
    %181 = vector.extract_strided_slice %180 {offsets = [0, 0], sizes = [2, 32], strides = [1, 1]} : vector<2x128xf32> to vector<2x32xf32>
    %182 = arith.negf %181 : vector<2x32xf32>
    %183 = math.exp %182 : vector<2x32xf32>
    %cst_38 = arith.constant 1.000000e+00 : f32
    %184 = vector.broadcast %cst_38 : f32 to vector<2x32xf32>
    %185 = arith.addf %184, %183 : vector<2x32xf32>
    %186 = arith.divf %184, %185 : vector<2x32xf32>
    %187 = vector.extract_strided_slice %180 {offsets = [0, 32], sizes = [2, 32], strides = [1, 1]} : vector<2x128xf32> to vector<2x32xf32>
    %188 = arith.negf %187 : vector<2x32xf32>
    %189 = math.exp %188 : vector<2x32xf32>
    %cst_39 = arith.constant 1.000000e+00 : f32
    %190 = vector.broadcast %cst_39 : f32 to vector<2x32xf32>
    %191 = arith.addf %190, %189 : vector<2x32xf32>
    %192 = arith.divf %190, %191 : vector<2x32xf32>
    %193 = vector.extract_strided_slice %180 {offsets = [0, 64], sizes = [2, 32], strides = [1, 1]} : vector<2x128xf32> to vector<2x32xf32>
    %194 = math.tanh %193 : vector<2x32xf32>
    %195 = vector.extract_strided_slice %180 {offsets = [0, 96], sizes = [2, 32], strides = [1, 1]} : vector<2x128xf32> to vector<2x32xf32>
    %196 = arith.negf %195 : vector<2x32xf32>
    %197 = math.exp %196 : vector<2x32xf32>
    %cst_40 = arith.constant 1.000000e+00 : f32
    %198 = vector.broadcast %cst_40 : f32 to vector<2x32xf32>
    %199 = arith.addf %198, %197 : vector<2x32xf32>
    %200 = arith.divf %198, %199 : vector<2x32xf32>
    %201 = arith.mulf %192, %173 : vector<2x32xf32>
    %202 = arith.mulf %186, %194 : vector<2x32xf32>
    %203 = arith.addf %201, %202 : vector<2x32xf32>
    %204 = math.tanh %203 : vector<2x32xf32>
    %205 = arith.mulf %200, %204 : vector<2x32xf32>
    %206 = vector.extract_strided_slice %31 {offsets = [8, 0], sizes = [2, 32], strides = [1, 1]} : vector<16x32xf32> to vector<2x32xf32>
    %207 = arith.subf %203, %173 : vector<2x32xf32>
    %208 = arith.mulf %206, %207 : vector<2x32xf32>
    %209 = arith.addf %173, %208 : vector<2x32xf32>
    %210 = arith.subf %205, %176 : vector<2x32xf32>
    %211 = arith.mulf %206, %210 : vector<2x32xf32>
    %212 = arith.addf %176, %211 : vector<2x32xf32>
    %213 = arith.mulf %206, %205 : vector<2x32xf32>
    %214 = vector.extract_strided_slice %29 {offsets = [10, 0], sizes = [2, 128], strides = [1, 1]} : vector<16x128xf32> to vector<2x128xf32>
    %cst_41 = arith.constant dense<0.000000e+00> : vector<2x128xf32>
    %215 = tpu.matmul %212, %30, %cst_41 {dimension_numbers = #tpu.dot_dimension_numbers<[1], [0], [0], [1], [0, 0, 1, 1], [], []>} : vector<2x32xf32>, vector<32x128xf32>, vector<2x128xf32> -> vector<2x128xf32>
    %216 = arith.addf %214, %215 : vector<2x128xf32>
    %217 = vector.extract_strided_slice %216 {offsets = [0, 0], sizes = [2, 32], strides = [1, 1]} : vector<2x128xf32> to vector<2x32xf32>
    %218 = arith.negf %217 : vector<2x32xf32>
    %219 = math.exp %218 : vector<2x32xf32>
    %cst_42 = arith.constant 1.000000e+00 : f32
    %220 = vector.broadcast %cst_42 : f32 to vector<2x32xf32>
    %221 = arith.addf %220, %219 : vector<2x32xf32>
    %222 = arith.divf %220, %221 : vector<2x32xf32>
    %223 = vector.extract_strided_slice %216 {offsets = [0, 32], sizes = [2, 32], strides = [1, 1]} : vector<2x128xf32> to vector<2x32xf32>
    %224 = arith.negf %223 : vector<2x32xf32>
    %225 = math.exp %224 : vector<2x32xf32>
    %cst_43 = arith.constant 1.000000e+00 : f32
    %226 = vector.broadcast %cst_43 : f32 to vector<2x32xf32>
    %227 = arith.addf %226, %225 : vector<2x32xf32>
    %228 = arith.divf %226, %227 : vector<2x32xf32>
    %229 = vector.extract_strided_slice %216 {offsets = [0, 64], sizes = [2, 32], strides = [1, 1]} : vector<2x128xf32> to vector<2x32xf32>
    %230 = math.tanh %229 : vector<2x32xf32>
    %231 = vector.extract_strided_slice %216 {offsets = [0, 96], sizes = [2, 32], strides = [1, 1]} : vector<2x128xf32> to vector<2x32xf32>
    %232 = arith.negf %231 : vector<2x32xf32>
    %233 = math.exp %232 : vector<2x32xf32>
    %cst_44 = arith.constant 1.000000e+00 : f32
    %234 = vector.broadcast %cst_44 : f32 to vector<2x32xf32>
    %235 = arith.addf %234, %233 : vector<2x32xf32>
    %236 = arith.divf %234, %235 : vector<2x32xf32>
    %237 = arith.mulf %228, %209 : vector<2x32xf32>
    %238 = arith.mulf %222, %230 : vector<2x32xf32>
    %239 = arith.addf %237, %238 : vector<2x32xf32>
    %240 = math.tanh %239 : vector<2x32xf32>
    %241 = arith.mulf %236, %240 : vector<2x32xf32>
    %242 = vector.extract_strided_slice %31 {offsets = [10, 0], sizes = [2, 32], strides = [1, 1]} : vector<16x32xf32> to vector<2x32xf32>
    %243 = arith.subf %239, %209 : vector<2x32xf32>
    %244 = arith.mulf %242, %243 : vector<2x32xf32>
    %245 = arith.addf %209, %244 : vector<2x32xf32>
    %246 = arith.subf %241, %212 : vector<2x32xf32>
    %247 = arith.mulf %242, %246 : vector<2x32xf32>
    %248 = arith.addf %212, %247 : vector<2x32xf32>
    %249 = arith.mulf %242, %241 : vector<2x32xf32>
    %250 = vector.extract_strided_slice %29 {offsets = [12, 0], sizes = [2, 128], strides = [1, 1]} : vector<16x128xf32> to vector<2x128xf32>
    %cst_45 = arith.constant dense<0.000000e+00> : vector<2x128xf32>
    %251 = tpu.matmul %248, %30, %cst_45 {dimension_numbers = #tpu.dot_dimension_numbers<[1], [0], [0], [1], [0, 0, 1, 1], [], []>} : vector<2x32xf32>, vector<32x128xf32>, vector<2x128xf32> -> vector<2x128xf32>
    %252 = arith.addf %250, %251 : vector<2x128xf32>
    %253 = vector.extract_strided_slice %252 {offsets = [0, 0], sizes = [2, 32], strides = [1, 1]} : vector<2x128xf32> to vector<2x32xf32>
    %254 = arith.negf %253 : vector<2x32xf32>
    %255 = math.exp %254 : vector<2x32xf32>
    %cst_46 = arith.constant 1.000000e+00 : f32
    %256 = vector.broadcast %cst_46 : f32 to vector<2x32xf32>
    %257 = arith.addf %256, %255 : vector<2x32xf32>
    %258 = arith.divf %256, %257 : vector<2x32xf32>
    %259 = vector.extract_strided_slice %252 {offsets = [0, 32], sizes = [2, 32], strides = [1, 1]} : vector<2x128xf32> to vector<2x32xf32>
    %260 = arith.negf %259 : vector<2x32xf32>
    %261 = math.exp %260 : vector<2x32xf32>
    %cst_47 = arith.constant 1.000000e+00 : f32
    %262 = vector.broadcast %cst_47 : f32 to vector<2x32xf32>
    %263 = arith.addf %262, %261 : vector<2x32xf32>
    %264 = arith.divf %262, %263 : vector<2x32xf32>
    %265 = vector.extract_strided_slice %252 {offsets = [0, 64], sizes = [2, 32], strides = [1, 1]} : vector<2x128xf32> to vector<2x32xf32>
    %266 = math.tanh %265 : vector<2x32xf32>
    %267 = vector.extract_strided_slice %252 {offsets = [0, 96], sizes = [2, 32], strides = [1, 1]} : vector<2x128xf32> to vector<2x32xf32>
    %268 = arith.negf %267 : vector<2x32xf32>
    %269 = math.exp %268 : vector<2x32xf32>
    %cst_48 = arith.constant 1.000000e+00 : f32
    %270 = vector.broadcast %cst_48 : f32 to vector<2x32xf32>
    %271 = arith.addf %270, %269 : vector<2x32xf32>
    %272 = arith.divf %270, %271 : vector<2x32xf32>
    %273 = arith.mulf %264, %245 : vector<2x32xf32>
    %274 = arith.mulf %258, %266 : vector<2x32xf32>
    %275 = arith.addf %273, %274 : vector<2x32xf32>
    %276 = math.tanh %275 : vector<2x32xf32>
    %277 = arith.mulf %272, %276 : vector<2x32xf32>
    %278 = vector.extract_strided_slice %31 {offsets = [12, 0], sizes = [2, 32], strides = [1, 1]} : vector<16x32xf32> to vector<2x32xf32>
    %279 = arith.subf %275, %245 : vector<2x32xf32>
    %280 = arith.mulf %278, %279 : vector<2x32xf32>
    %281 = arith.addf %245, %280 : vector<2x32xf32>
    %282 = arith.subf %277, %248 : vector<2x32xf32>
    %283 = arith.mulf %278, %282 : vector<2x32xf32>
    %284 = arith.addf %248, %283 : vector<2x32xf32>
    %285 = arith.mulf %278, %277 : vector<2x32xf32>
    %286 = vector.extract_strided_slice %29 {offsets = [14, 0], sizes = [2, 128], strides = [1, 1]} : vector<16x128xf32> to vector<2x128xf32>
    %cst_49 = arith.constant dense<0.000000e+00> : vector<2x128xf32>
    %287 = tpu.matmul %284, %30, %cst_49 {dimension_numbers = #tpu.dot_dimension_numbers<[1], [0], [0], [1], [0, 0, 1, 1], [], []>} : vector<2x32xf32>, vector<32x128xf32>, vector<2x128xf32> -> vector<2x128xf32>
    %288 = arith.addf %286, %287 : vector<2x128xf32>
    %289 = vector.extract_strided_slice %288 {offsets = [0, 0], sizes = [2, 32], strides = [1, 1]} : vector<2x128xf32> to vector<2x32xf32>
    %290 = arith.negf %289 : vector<2x32xf32>
    %291 = math.exp %290 : vector<2x32xf32>
    %cst_50 = arith.constant 1.000000e+00 : f32
    %292 = vector.broadcast %cst_50 : f32 to vector<2x32xf32>
    %293 = arith.addf %292, %291 : vector<2x32xf32>
    %294 = arith.divf %292, %293 : vector<2x32xf32>
    %295 = vector.extract_strided_slice %288 {offsets = [0, 32], sizes = [2, 32], strides = [1, 1]} : vector<2x128xf32> to vector<2x32xf32>
    %296 = arith.negf %295 : vector<2x32xf32>
    %297 = math.exp %296 : vector<2x32xf32>
    %cst_51 = arith.constant 1.000000e+00 : f32
    %298 = vector.broadcast %cst_51 : f32 to vector<2x32xf32>
    %299 = arith.addf %298, %297 : vector<2x32xf32>
    %300 = arith.divf %298, %299 : vector<2x32xf32>
    %301 = vector.extract_strided_slice %288 {offsets = [0, 64], sizes = [2, 32], strides = [1, 1]} : vector<2x128xf32> to vector<2x32xf32>
    %302 = math.tanh %301 : vector<2x32xf32>
    %303 = vector.extract_strided_slice %288 {offsets = [0, 96], sizes = [2, 32], strides = [1, 1]} : vector<2x128xf32> to vector<2x32xf32>
    %304 = arith.negf %303 : vector<2x32xf32>
    %305 = math.exp %304 : vector<2x32xf32>
    %cst_52 = arith.constant 1.000000e+00 : f32
    %306 = vector.broadcast %cst_52 : f32 to vector<2x32xf32>
    %307 = arith.addf %306, %305 : vector<2x32xf32>
    %308 = arith.divf %306, %307 : vector<2x32xf32>
    %309 = arith.mulf %300, %281 : vector<2x32xf32>
    %310 = arith.mulf %294, %302 : vector<2x32xf32>
    %311 = arith.addf %309, %310 : vector<2x32xf32>
    %312 = math.tanh %311 : vector<2x32xf32>
    %313 = arith.mulf %308, %312 : vector<2x32xf32>
    %314 = vector.extract_strided_slice %31 {offsets = [14, 0], sizes = [2, 32], strides = [1, 1]} : vector<16x32xf32> to vector<2x32xf32>
    %315 = arith.subf %311, %281 : vector<2x32xf32>
    %316 = arith.mulf %314, %315 : vector<2x32xf32>
    %317 = arith.addf %281, %316 : vector<2x32xf32>
    %318 = arith.mulf %314, %313 : vector<2x32xf32>
    %319 = tpu.concatenate %69, %105, %141, %177, %213, %249, %285, %318 in 1 : vector<2x32xf32>, vector<2x32xf32>, vector<2x32xf32>, vector<2x32xf32>, vector<2x32xf32>, vector<2x32xf32>, vector<2x32xf32>, vector<2x32xf32> -> vector<2x256xf32>
    %c0_53 = arith.constant 0 : index
    %c0_54 = arith.constant 0 : index
    %320 = vector.load %arg7[%c0_53, %c0_54] : memref<2x256xf32, #tpu.memory_space<vmem>>, vector<2x256xf32>
    tpu.vector_store %arg7[%c0_53, %c0_54], %319 {strides = array<i32>} : memref<2x256xf32, #tpu.memory_space<vmem>>, vector<2x256xf32>,
    %c0_55 = arith.constant 0 : index
    %c0_56 = arith.constant 0 : index
    %321 = vector.load %arg8[%c0_55, %c0_56] : memref<2x32xf32, #tpu.memory_space<vmem>>, vector<2x32xf32>
    tpu.vector_store %arg8[%c0_55, %c0_56], %317 {strides = array<i32>} : memref<2x32xf32, #tpu.memory_space<vmem>>, vector<2x32xf32>,
    return
  }
}

</mosaic_0001>

<llo_original>
// kernel: tpu_custom_call.1
$region0: #{tpu_custom_call.1}
  #allocation0 [shape = 'u32[]', space=smem, size = 0x4, offset = 0x4, fixed_abs, tag = 'smem constant byte address 0x4 - core index']
  #allocation1 [shape = 'u32[144,128]{1,0:T(1,128)}', space=vmem, size = 0x12000, scoped, tag = 'internal scratch']
  %s0 = inlined_call_operand.hbm [shape: f32[16,16], index: 0, kind: input, shape index: {}]
  %s1 = inlined_call_operand.hbm [shape: f32[16,32], index: 1, kind: input, shape index: {}]
  %s2 = inlined_call_operand.vmem [shape: f32[1,16], index: 2, kind: input, shape index: {}]
  %s3 = inlined_call_operand.vmem [shape: f32[1,16], index: 3, kind: input, shape index: {}]
  %s4 = inlined_call_operand.hbm [shape: f32[16,128], index: 4, kind: input, shape index: {}]
  %s5 = inlined_call_operand.hbm [shape: f32[32,128], index: 5, kind: input, shape index: {}]
  %s6 = inlined_call_operand.vmem [shape: f32[1,128], index: 6, kind: input, shape index: {}]
  %s7 = inlined_call_operand.hbm [shape: f32[2,256], index: 7, kind: output, shape index: {0}]
  %s8 = inlined_call_operand.hbm [shape: f32[2,32], index: 8, kind: output, shape index: {1}]
  %9 = xla_tuple %s7, %s8
  %s10 = sld [smem:[#allocation0]]
  $region62: #{tpu_custom_call.1} parent=0
    _
  %s12 = ssub.s32 1, %s10
  %s13 = scalar_select 0, %s12, %s10
  $region1: #{tpu_custom_call.1} parent=0
    #allocation2 [shape = 'u8[8192]{0}', space=vmem, size = 0x2000, scoped, tag = 'input window, operand 0, single buffered']
    #allocation3 [shape = 's32[1]{0}', space=sflag, size = 0x4, scoped, tag = 'scoped memory for tpu_custom_call.1']
    #allocation4 [shape = 's32[1]{0}', space=sflag, size = 0x4, scoped, tag = 'scoped memory for tpu_custom_call.1']
    #allocation5 [shape = 'u8[8192]{0}', space=vmem, size = 0x2000, scoped, tag = 'input window, operand 1, single buffered']
    #allocation6 [shape = 's32[1]{0}', space=sflag, size = 0x4, scoped, tag = 'scoped memory for tpu_custom_call.1']
    #allocation7 [shape = 'u8[8192]{0}', space=vmem, size = 0x2000, scoped, tag = 'input window, operand 4, single buffered']
    #allocation8 [shape = 'u8[16384]{0}', space=vmem, size = 0x4000, scoped, tag = 'input window, operand 5, single buffered']
    #allocation9 [shape = 's32[1]{0}', space=sflag, size = 0x4, scoped, tag = 'scoped memory for tpu_custom_call.1']
    #allocation10 [shape = 'u8[2048]{0}', space=vmem, size = 0x800, scoped, tag = 'output window, operand 0, single buffered']
    #allocation11 [shape = 'u8[1024]{0}', space=vmem, size = 0x400, scoped, tag = 'output window, operand 1, single buffered']
    #allocation12 [shape = 's32[1]{0}', space=sflag, size = 0x4, scoped, tag = 'scoped memory for tpu_custom_call.1']
    %14 = vsyncpa [#allocation3], 0
    %15 = vsyncpa [#allocation6], 0
    %16 = vsyncpa [#allocation9], 0
    %17 = vsyncpa [#allocation4], 0
    %18 = vsyncpa [#allocation12], 0
    // Predicated region
    $region2: #{tpu_custom_call.1} parent=1 // pred_check
      _
    $region3: #{tpu_custom_call.1} parent=1 // pred_check_branch
      %20 = sbr.rel (0) target = $region5
    $region4: #{tpu_custom_call.1} parent=1 // pred_region
      %s22 = ssub.s32 256, 256
      %23 = vsyncadd [#allocation3], %s22
      %s24 = sshll.u32 [#allocation2], 4
      %s25 = int_to_ptr.vmem [resolvable:$true] %s24
      %30 = dma.hbm_to_vmem [thread:$0]  %s0, 256, %s25, [#allocation3], 128, 128, 8
    $region5: #{tpu_custom_call.1} parent=1 // pred_fallthru
      _
    // Predicated region
    $region6: #{tpu_custom_call.1} parent=1 // pred_check
      _
    $region7: #{tpu_custom_call.1} parent=1 // pred_check_branch
      %32 = sbr.rel (0) target = $region9
    $region8: #{tpu_custom_call.1} parent=1 // pred_region
      %s34 = ssub.s32 256, 256
      %35 = vsyncadd [#allocation6], %s34
      %s36 = sshll.u32 [#allocation5], 4
      %s37 = int_to_ptr.vmem [resolvable:$true] %s36
      %42 = dma.hbm_to_vmem [thread:$0]  %s1, 256, %s37, [#allocation6], 128, 128, 8
    $region9: #{tpu_custom_call.1} parent=1 // pred_fallthru
      _
    // Predicated region
    $region10: #{tpu_custom_call.1} parent=1 // pred_check
      _
    $region11: #{tpu_custom_call.1} parent=1 // pred_check_branch
      %44 = sbr.rel (0) target = $region13
    $region12: #{tpu_custom_call.1} parent=1 // pred_region
      _
    $region13: #{tpu_custom_call.1} parent=1 // pred_fallthru
      _
    // Predicated region
    $region14: #{tpu_custom_call.1} parent=1 // pred_check
      _
    $region15: #{tpu_custom_call.1} parent=1 // pred_check_branch
      %46 = sbr.rel (0) target = $region17
    $region16: #{tpu_custom_call.1} parent=1 // pred_region
      _
    $region17: #{tpu_custom_call.1} parent=1 // pred_fallthru
      _
    // Predicated region
    $region18: #{tpu_custom_call.1} parent=1 // pred_check
      _
    $region19: #{tpu_custom_call.1} parent=1 // pred_check_branch
      %48 = sbr.rel (0) target = $region21
    $region20: #{tpu_custom_call.1} parent=1 // pred_region
      %s50 = ssub.s32 256, 256
      %51 = vsyncadd [#allocation6], %s50
      %s52 = sshll.u32 [#allocation7], 4
      %s53 = int_to_ptr.vmem [resolvable:$true] %s52
      %58 = dma.hbm_to_vmem [thread:$0]  %s4, 256, %s53, [#allocation6], 128, 128, 8
    $region21: #{tpu_custom_call.1} parent=1 // pred_fallthru
      _
    // Predicated region
    $region22: #{tpu_custom_call.1} parent=1 // pred_check
      _
    $region23: #{tpu_custom_call.1} parent=1 // pred_check_branch
      %60 = sbr.rel (0) target = $region25
    $region24: #{tpu_custom_call.1} parent=1 // pred_region
      %s62 = ssub.s32 512, 512
      %63 = vsyncadd [#allocation9], %s62
      %s64 = sshll.u32 [#allocation8], 4
      %s65 = int_to_ptr.vmem [resolvable:$true] %s64
      %70 = dma.hbm_to_vmem [thread:$0]  %s5, 512, %s65, [#allocation9], 128, 128, 8
    $region25: #{tpu_custom_call.1} parent=1 // pred_fallthru
      _
    // Predicated region
    $region26: #{tpu_custom_call.1} parent=1 // pred_check
      _
    $region27: #{tpu_custom_call.1} parent=1 // pred_check_branch
      %72 = sbr.rel (0) target = $region29
    $region28: #{tpu_custom_call.1} parent=1 // pred_region
      _
    $region29: #{tpu_custom_call.1} parent=1 // pred_fallthru
      _
    // Predicated region
    $region30: #{tpu_custom_call.1} parent=1 // pred_check
      _
    $region31: #{tpu_custom_call.1} parent=1 // pred_check_branch
      %74 = sbr.rel (0) target = $region33
    $region32: #{tpu_custom_call.1} parent=1 // pred_region
      %75 = dma.done [#allocation3], 256
    $region33: #{tpu_custom_call.1} parent=1 // pred_fallthru
      _
    // Predicated region
    $region34: #{tpu_custom_call.1} parent=1 // pred_check
      _
    $region35: #{tpu_custom_call.1} parent=1 // pred_check_branch
      %77 = sbr.rel (0) target = $region37
    $region36: #{tpu_custom_call.1} parent=1 // pred_region
      %78 = dma.done [#allocation6], 256
    $region37: #{tpu_custom_call.1} parent=1 // pred_fallthru
      _
    // Predicated region
    $region38: #{tpu_custom_call.1} parent=1 // pred_check
      _
    $region39: #{tpu_custom_call.1} parent=1 // pred_check_branch
      %80 = sbr.rel (0) target = $region41
    $region40: #{tpu_custom_call.1} parent=1 // pred_region
      %81 = dma.done [#allocation6], 256
    $region41: #{tpu_custom_call.1} parent=1 // pred_fallthru
      _
    // Predicated region
    $region42: #{tpu_custom_call.1} parent=1 // pred_check
      _
    $region43: #{tpu_custom_call.1} parent=1 // pred_check_branch
      %83 = sbr.rel (0) target = $region45
    $region44: #{tpu_custom_call.1} parent=1 // pred_region
      %84 = dma.done [#allocation9], 512
    $region45: #{tpu_custom_call.1} parent=1 // pred_fallthru
      _
    %v85 = vld [vmem:[#allocation2] sm:$0xff]
    %v86 = vld [vmem:[#allocation2 + $0x8] sm:$0xff]
    %vm87 = vcmask 130048
    %v88 = vsel %vm87, %v85, 0.0
    %v89 = vsel %vm87, %v86, 0.0
    %v90 = vadd.f32 %v88, %v89
    %v91 = vrot.slane %v90, 4
    %v92 = vadd.f32 %v90, %v91
    %v93 = vrot.slane %v92, 2
    %v94 = vadd.f32 %v92, %v93
    %v95 = vrot.slane %v94, 1
    %v96 = vadd.f32 %v94, %v95
    %v97 = vrcp.pop 16.0
    %v98 = vmul.f32 %v96, %v97
    %v99 = vsub.f32 %v85, %v98
    %v100 = vsub.f32 %v86, %v98
    %v101 = vmul.f32 %v99, %v99
    %v102 = vmul.f32 %v100, %v100
    %v103 = vsel %vm87, %v101, 0.0
    %v104 = vsel %vm87, %v102, 0.0
    %v105 = vadd.f32 %v103, %v104
    %v106 = vrot.slane %v105, 4
    %v107 = vadd.f32 %v105, %v106
    %v108 = vrot.slane %v107, 2
    %v109 = vadd.f32 %v107, %v108
    %v110 = vrot.slane %v109, 1
    %v111 = vadd.f32 %v109, %v110
    %v112 = vmul.f32 %v111, %v97
    %v113 = vadd.f32 %v112, 1e-05
    %v114 = vrsqrt.pop %v113
    %v115 = vld [vmem:[%s2] sm:$0x1]
    %v116 = vmul.f32 %v114, %v115
    %v117 = vld [vmem:[%s3] sm:$0x1]
    %v118 = vmul.f32 %v98, %v116
    %v119 = vsub.f32 %v117, %v118
    %v120 = vld [vmem:[#allocation7] sm:$0xff]
    %v121 = vld [vmem:[#allocation7 + $0x8] sm:$0xff]
    %122 = vxpose.xlu0.b32.start [1/16] %v116, 128
    %123 = vxpose.xlu0.b32.cont [2/16] 0.0, 128
    %124 = vxpose.xlu0.b32.cont [3/16] 0.0, 128
    %125 = vxpose.xlu0.b32.cont [4/16] 0.0, 128
    %126 = vxpose.xlu0.b32.cont [5/16] 0.0, 128
    %127 = vxpose.xlu0.b32.cont [6/16] 0.0, 128
    %128 = vxpose.xlu0.b32.cont [7/16] 0.0, 128
    %129 = vxpose.xlu0.b32.cont [8/16] 0.0, 128
    %130 = vxpose.xlu0.b32.cont [9/16] 0.0, 128
    %131 = vxpose.xlu0.b32.cont [10/16] 0.0, 128
    %132 = vxpose.xlu0.b32.cont [11/16] 0.0, 128
    %133 = vxpose.xlu0.b32.cont [12/16] 0.0, 128
    %134 = vxpose.xlu0.b32.cont [13/16] 0.0, 128
    %135 = vxpose.xlu0.b32.cont [14/16] 0.0, 128
    %136 = vxpose.xlu0.b32.cont [15/16] 0.0, 128
    %137 = vxpose.xlu0.b32.end [16/16] 0.0, 128
    %v138 = vpop.trf.xlu0
    %v139 = vpop.trf.xlu0
    %v140 = vpop.trf.xlu0
    %v141 = vpop.trf.xlu0
    %v142 = vpop.trf.xlu0
    %v143 = vpop.trf.xlu0
    %v144 = vpop.trf.xlu0
    %v145 = vpop.trf.xlu0
    %v146 = vpop.trf.xlu0
    %v147 = vpop.trf.xlu0
    %v148 = vpop.trf.xlu0
    %v149 = vpop.trf.xlu0
    %v150 = vpop.trf.xlu0
    %v151 = vpop.trf.xlu0
    %v152 = vpop.trf.xlu0
    %v153 = vpop.trf.xlu0
    %155 = vset.pattern.permute.xlu0 0
    %156 = vperm.xlu0 %155, %v138
    %v157 = vpop.permute.xlu0 %156
    %160 = vset.pattern.permute.xlu0 0
    %161 = vperm.xlu0 %160, %v139
    %v162 = vpop.permute.xlu0 %161
    %v164 = vmul.f32 %v120, %v157
    %v165 = vmul.f32 %v121, %v162
    %v166 = vld [vmem:[%s6] sm:$0x1]
    %v168 = vsel %vm87, %v119, 0
    %170 = vmatprep.subr.mxu0 0.0
    %171 = vmatpush1.msra.mxu0 %v120
    %172 = vmatprep.subr.mxu0 0.0
    %173 = vmatpush1.msra.mxu0 %v121
    %174 = vmatprep.subr.mxu0 0.0
    %175 = vmatpush1.msra.mxu0 0.0
    %176 = vmatprep.subr.mxu0 0.0
    %177 = vmatpush1.msra.mxu0 0.0
    %178 = vmatprep.subr.mxu0 0.0
    %179 = vmatpush1.msra.mxu0 0.0
    %180 = vmatprep.subr.mxu0 0.0
    %181 = vmatpush1.msra.mxu0 0.0
    %182 = vmatprep.subr.mxu0 0.0
    %183 = vmatpush1.msra.mxu0 0.0
    %184 = vmatprep.subr.mxu0 0.0
    %185 = vmatpush1.msra.mxu0 0.0
    %186 = vmatprep.subr.mxu0 0.0
    %187 = vmatpush1.msra.mxu0 0.0
    %188 = vmatprep.subr.mxu0 0.0
    %189 = vmatpush1.msra.mxu0 0.0
    %190 = vmatprep.subr.mxu0 0.0
    %191 = vmatpush1.msra.mxu0 0.0
    %192 = vmatprep.subr.mxu0 0.0
    %193 = vmatpush1.msra.mxu0 0.0
    %194 = vmatprep.subr.mxu0 0.0
    %195 = vmatpush1.msra.mxu0 0.0
    %196 = vmatprep.subr.mxu0 0.0
    %197 = vmatpush1.msra.mxu0 0.0
    %198 = vmatprep.subr.mxu0 0.0
    %199 = vmatpush1.msra.mxu0 0.0
    %200 = vmatprep.subr.mxu0 0.0
    %201 = vmatpush1.msra.mxu0 0.0
    %202 = vmatprep.subr.mxu0 0.0
    %203 = vmatpush1.msra.mxu0 0.0
    %204 = vmatprep.subr.mxu0 0.0
    %205 = vmatpush1.msra.mxu0 0.0
    %206 = vmatprep.subr.mxu0 0.0
    %207 = vmatpush1.msra.mxu0 0.0
    %208 = vmatprep.subr.mxu0 0.0
    %209 = vmatpush1.msra.mxu0 0.0
    %210 = vmatprep.subr.mxu0 0.0
    %211 = vmatpush1.msra.mxu0 0.0
    %212 = vmatprep.subr.mxu0 0.0
    %213 = vmatpush1.msra.mxu0 0.0
    %214 = vmatprep.subr.mxu0 0.0
    %215 = vmatpush1.msra.mxu0 0.0
    %216 = vmatprep.subr.mxu0 0.0
    %217 = vmatpush1.msra.mxu0 0.0
    %218 = vmatprep.subr.mxu0 0.0
    %219 = vmatpush1.msra.mxu0 0.0
    %220 = vmatprep.subr.mxu0 0.0
    %221 = vmatpush1.msra.mxu0 0.0
    %222 = vmatprep.subr.mxu0 0.0
    %223 = vmatpush1.msra.mxu0 0.0
    %224 = vmatprep.subr.mxu0 0.0
    %225 = vmatpush1.msra.mxu0 0.0
    %226 = vmatprep.subr.mxu0 0.0
    %227 = vmatpush1.msra.mxu0 0.0
    %228 = vmatprep.subr.mxu0 0.0
    %229 = vmatpush1.msra.mxu0 0.0
    %230 = vmatprep.subr.mxu0 0.0
    %231 = vmatpush1.msra.mxu0 0.0
    %232 = vmatprep.subr.mxu0 0.0
    %233 = vmatpush1.msra.mxu0 0.0
    %234 = vmatprep.mubr.f32.mxu0 0.0
    %235 = vmatmul.mubr.f32.gmra.mrb[0].mxu0 %v168
    %v236 = vpop.f32.mrb[0].mxu0
    %v237 = vadd.f32 %v166, %v236
    %v238 = vpop.f32.mrb[0].mxu0
    %239 = vdwg.mxu0
    %v240 = vlaneseq
    %v241 = vshrl.u32 %v240, 7
    %v242 = vsub.s32 0, %v241
    %v243 = vrot.slane %v237, %v242
    %v245 = vsel %vm87, %v85, 0
    %v248 = vsel %vm87, %v86, 0
    %250 = vmatprep.subr.mxu0 0.0
    %251 = vmatpush1.msra.mxu0 %v164
    %252 = vmatprep.subr.mxu0 0.0
    %253 = vmatpush1.msra.mxu0 %v165
    %254 = vmatprep.subr.mxu0 0.0
    %255 = vmatpush1.msra.mxu0 0.0
    %256 = vmatprep.subr.mxu0 0.0
    %257 = vmatpush1.msra.mxu0 0.0
    %258 = vmatprep.subr.mxu0 0.0
    %259 = vmatpush1.msra.mxu0 0.0
    %260 = vmatprep.subr.mxu0 0.0
    %261 = vmatpush1.msra.mxu0 0.0
    %262 = vmatprep.subr.mxu0 0.0
    %263 = vmatpush1.msra.mxu0 0.0
    %264 = vmatprep.subr.mxu0 0.0
    %265 = vmatpush1.msra.mxu0 0.0
    %266 = vmatprep.subr.mxu0 0.0
    %267 = vmatpush1.msra.mxu0 0.0
    %268 = vmatprep.subr.mxu0 0.0
    %269 = vmatpush1.msra.mxu0 0.0
    %270 = vmatprep.subr.mxu0 0.0
    %271 = vmatpush1.msra.mxu0 0.0
    %272 = vmatprep.subr.mxu0 0.0
    %273 = vmatpush1.msra.mxu0 0.0
    %274 = vmatprep.subr.mxu0 0.0
    %275 = vmatpush1.msra.mxu0 0.0
    %276 = vmatprep.subr.mxu0 0.0
    %277 = vmatpush1.msra.mxu0 0.0
    %278 = vmatprep.subr.mxu0 0.0
    %279 = vmatpush1.msra.mxu0 0.0
    %280 = vmatprep.subr.mxu0 0.0
    %281 = vmatpush1.msra.mxu0 0.0
    %282 = vmatprep.subr.mxu0 0.0
    %283 = vmatpush1.msra.mxu0 0.0
    %284 = vmatprep.subr.mxu0 0.0
    %285 = vmatpush1.msra.mxu0 0.0
    %286 = vmatprep.subr.mxu0 0.0
    %287 = vmatpush1.msra.mxu0 0.0
    %288 = vmatprep.subr.mxu0 0.0
    %289 = vmatpush1.msra.mxu0 0.0
    %290 = vmatprep.subr.mxu0 0.0
    %291 = vmatpush1.msra.mxu0 0.0
    %292 = vmatprep.subr.mxu0 0.0
    %293 = vmatpush1.msra.mxu0 0.0
    %294 = vmatprep.subr.mxu0 0.0
    %295 = vmatpush1.msra.mxu0 0.0
    %296 = vmatprep.subr.mxu0 0.0
    %297 = vmatpush1.msra.mxu0 0.0
    %298 = vmatprep.subr.mxu0 0.0
    %299 = vmatpush1.msra.mxu0 0.0
    %300 = vmatprep.subr.mxu0 0.0
    %301 = vmatpush1.msra.mxu0 0.0
    %302 = vmatprep.subr.mxu0 0.0
    %303 = vmatpush1.msra.mxu0 0.0
    %304 = vmatprep.subr.mxu0 0.0
    %305 = vmatpush1.msra.mxu0 0.0
    %306 = vmatprep.subr.mxu0 0.0
    %307 = vmatpush1.msra.mxu0 0.0
    %308 = vmatprep.subr.mxu0 0.0
    %309 = vmatpush1.msra.mxu0 0.0
    %310 = vmatprep.subr.mxu0 0.0
    %311 = vmatpush1.msra.mxu0 0.0
    %312 = vmatprep.subr.mxu0 0.0
    %313 = vmatpush1.msra.mxu0 0.0
    %314 = vmatprep.mubr.f32.mxu0 0.0
    %315 = vmatmul.mubr.f32.gmra.mrb[0].mxu0 %v245
    %v316 = vpop.f32.mrb[0].mxu0
    %v317 = vadd.f32 %v243, %v316
    %v318 = vpop.f32.mrb[0].mxu0
    %319 = vmatprep.mubr.f32.mxu0 0.0
    %320 = vmatmul.mubr.f32.gmra.mrb[0].mxu0 %v248
    %v321 = vpop.f32.mrb[0].mxu0
    %v322 = vadd.f32 %v243, %v321
    %v323 = vpop.f32.mrb[0].mxu0
    %324 = vdwg.mxu0
    %v325 = vld [vmem:[#allocation8] sm:$0xff]
    %v326 = vld [vmem:[#allocation8 + $0x8] sm:$0xff]
    %v327 = vld [vmem:[#allocation8 + $0x10] sm:$0xff]
    %v328 = vld [vmem:[#allocation8 + $0x18] sm:$0xff]
    %v329 = vld [vmem:[#allocation5] sm:$0xff]
    %v330 = vld [vmem:[#allocation5 + $0x8] sm:$0xff]
    %vm331 = vcmask 261120
    %v333 = vsel %vm331, 0.0, 0
    %335 = vmatprep.subr.mxu0 0.0
    %336 = vmatpush1.msra.mxu0 %v325
    %337 = vmatprep.subr.mxu0 0.0
    %338 = vmatpush1.msra.mxu0 %v326
    %339 = vmatprep.subr.mxu0 0.0
    %340 = vmatpush1.msra.mxu0 %v327
    %341 = vmatprep.subr.mxu0 0.0
    %342 = vmatpush1.msra.mxu0 %v328
    %343 = vmatprep.subr.mxu0 0.0
    %344 = vmatpush1.msra.mxu0 0.0
    %345 = vmatprep.subr.mxu0 0.0
    %346 = vmatpush1.msra.mxu0 0.0
    %347 = vmatprep.subr.mxu0 0.0
    %348 = vmatpush1.msra.mxu0 0.0
    %349 = vmatprep.subr.mxu0 0.0
    %350 = vmatpush1.msra.mxu0 0.0
    %351 = vmatprep.subr.mxu0 0.0
    %352 = vmatpush1.msra.mxu0 0.0
    %353 = vmatprep.subr.mxu0 0.0
    %354 = vmatpush1.msra.mxu0 0.0
    %355 = vmatprep.subr.mxu0 0.0
    %356 = vmatpush1.msra.mxu0 0.0
    %357 = vmatprep.subr.mxu0 0.0
    %358 = vmatpush1.msra.mxu0 0.0
    %359 = vmatprep.subr.mxu0 0.0
    %360 = vmatpush1.msra.mxu0 0.0
    %361 = vmatprep.subr.mxu0 0.0
    %362 = vmatpush1.msra.mxu0 0.0
    %363 = vmatprep.subr.mxu0 0.0
    %364 = vmatpush1.msra.mxu0 0.0
    %365 = vmatprep.subr.mxu0 0.0
    %366 = vmatpush1.msra.mxu0 0.0
    %367 = vmatprep.subr.mxu0 0.0
    %368 = vmatpush1.msra.mxu0 0.0
    %369 = vmatprep.subr.mxu0 0.0
    %370 = vmatpush1.msra.mxu0 0.0
    %371 = vmatprep.subr.mxu0 0.0
    %372 = vmatpush1.msra.mxu0 0.0
    %373 = vmatprep.subr.mxu0 0.0
    %374 = vmatpush1.msra.mxu0 0.0
    %375 = vmatprep.subr.mxu0 0.0
    %376 = vmatpush1.msra.mxu0 0.0
    %377 = vmatprep.subr.mxu0 0.0
    %378 = vmatpush1.msra.mxu0 0.0
    %379 = vmatprep.subr.mxu0 0.0
    %380 = vmatpush1.msra.mxu0 0.0
    %381 = vmatprep.subr.mxu0 0.0
    %382 = vmatpush1.msra.mxu0 0.0
    %383 = vmatprep.subr.mxu0 0.0
    %384 = vmatpush1.msra.mxu0 0.0
    %385 = vmatprep.subr.mxu0 0.0
    %386 = vmatpush1.msra.mxu0 0.0
    %387 = vmatprep.subr.mxu0 0.0
    %388 = vmatpush1.msra.mxu0 0.0
    %389 = vmatprep.subr.mxu0 0.0
    %390 = vmatpush1.msra.mxu0 0.0
    %391 = vmatprep.subr.mxu0 0.0
    %392 = vmatpush1.msra.mxu0 0.0
    %393 = vmatprep.subr.mxu0 0.0
    %394 = vmatpush1.msra.mxu0 0.0
    %395 = vmatprep.subr.mxu0 0.0
    %396 = vmatpush1.msra.mxu0 0.0
    %397 = vmatprep.subr.mxu0 0.0
    %398 = vmatpush1.msra.mxu0 0.0
    %399 = vmatprep.mubr.f32.mxu0 0.0
    %400 = vmatmul.mubr.f32.gmra.mrb[0].mxu0 %v333
    %v401 = vpop.f32.mrb[0].mxu0
    %v402 = vadd.f32 0.0, %v401
    %v403 = vpop.f32.mrb[0].mxu0
    %404 = vdwg.mxu0
    %v405 = vadd.f32 %v317, %v402
    %v406 = vxor.u32 %v405, 2147483648
    %v407 = vmul.f32 %v406, 1.442695
    %v408 = vpow.pop %v407
    %v409 = vadd.f32 %v408, 1.0
    %v410 = vrcp.pop %v409
    %v411 = vmul.f32 1.0, %v410
    %v412 = vtanh.pop %v405
    %v413 = vmul.f32 %v411, 0.0
    %415 = vrot.lane.b32.xlu0 %v412, 64
    %v416 = vpop.permute.xlu0 %415
    %v418 = vmul.f32 %v411, %v416
    %420 = vrot.lane.b32.xlu0 %v418, 32
    %v421 = vpop.permute.xlu0 %420
    %v423 = vadd.f32 %v413, %v421
    %v424 = vtanh.pop %v423
    %426 = vrot.lane.b32.xlu0 %v424, 64
    %v427 = vpop.permute.xlu0 %426
    %v429 = vmul.f32 %v411, %v427
    %431 = vrot.lane.b32.xlu0 %v423, 96
    %v432 = vpop.permute.xlu0 %431
    %v434 = vmul.f32 %v329, %v432
    %v435 = vadd.f32 %v434, 0.0
    %437 = vrot.lane.b32.xlu0 %v429, 32
    %v438 = vpop.permute.xlu0 %437
    %v440 = vmul.f32 %v329, %v438
    %v441 = vadd.f32 %v440, 0.0
    %v443 = vsel %vm331, %v441, 0
    %445 = vmatprep.subr.mxu0 0.0
    %446 = vmatpush1.msra.mxu0 %v325
    %447 = vmatprep.subr.mxu0 0.0
    %448 = vmatpush1.msra.mxu0 %v326
    %449 = vmatprep.subr.mxu0 0.0
    %450 = vmatpush1.msra.mxu0 %v327
    %451 = vmatprep.subr.mxu0 0.0
    %452 = vmatpush1.msra.mxu0 %v328
    %453 = vmatprep.subr.mxu0 0.0
    %454 = vmatpush1.msra.mxu0 0.0
    %455 = vmatprep.subr.mxu0 0.0
    %456 = vmatpush1.msra.mxu0 0.0
    %457 = vmatprep.subr.mxu0 0.0
    %458 = vmatpush1.msra.mxu0 0.0
    %459 = vmatprep.subr.mxu0 0.0
    %460 = vmatpush1.msra.mxu0 0.0
    %461 = vmatprep.subr.mxu0 0.0
    %462 = vmatpush1.msra.mxu0 0.0
    %463 = vmatprep.subr.mxu0 0.0
    %464 = vmatpush1.msra.mxu0 0.0
    %465 = vmatprep.subr.mxu0 0.0
    %466 = vmatpush1.msra.mxu0 0.0
    %467 = vmatprep.subr.mxu0 0.0
    %468 = vmatpush1.msra.mxu0 0.0
    %469 = vmatprep.subr.mxu0 0.0
    %470 = vmatpush1.msra.mxu0 0.0
    %471 = vmatprep.subr.mxu0 0.0
    %472 = vmatpush1.msra.mxu0 0.0
    %473 = vmatprep.subr.mxu0 0.0
    %474 = vmatpush1.msra.mxu0 0.0
    %475 = vmatprep.subr.mxu0 0.0
    %476 = vmatpush1.msra.mxu0 0.0
    %477 = vmatprep.subr.mxu0 0.0
    %478 = vmatpush1.msra.mxu0 0.0
    %479 = vmatprep.subr.mxu0 0.0
    %480 = vmatpush1.msra.mxu0 0.0
    %481 = vmatprep.subr.mxu0 0.0
    %482 = vmatpush1.msra.mxu0 0.0
    %483 = vmatprep.subr.mxu0 0.0
    %484 = vmatpush1.msra.mxu0 0.0
    %485 = vmatprep.subr.mxu0 0.0
    %486 = vmatpush1.msra.mxu0 0.0
    %487 = vmatprep.subr.mxu0 0.0
    %488 = vmatpush1.msra.mxu0 0.0
    %489 = vmatprep.subr.mxu0 0.0
    %490 = vmatpush1.msra.mxu0 0.0
    %491 = vmatprep.subr.mxu0 0.0
    %492 = vmatpush1.msra.mxu0 0.0
    %493 = vmatprep.subr.mxu0 0.0
    %494 = vmatpush1.msra.mxu0 0.0
    %495 = vmatprep.subr.mxu0 0.0
    %496 = vmatpush1.msra.mxu0 0.0
    %497 = vmatprep.subr.mxu0 0.0
    %498 = vmatpush1.msra.mxu0 0.0
    %499 = vmatprep.subr.mxu0 0.0
    %500 = vmatpush1.msra.mxu0 0.0
    %501 = vmatprep.subr.mxu0 0.0
    %502 = vmatpush1.msra.mxu0 0.0
    %503 = vmatprep.subr.mxu0 0.0
    %504 = vmatpush1.msra.mxu0 0.0
    %505 = vmatprep.subr.mxu0 0.0
    %506 = vmatpush1.msra.mxu0 0.0
    %507 = vmatprep.subr.mxu0 0.0
    %508 = vmatpush1.msra.mxu0 0.0
    %509 = vmatprep.mubr.f32.mxu0 0.0
    %510 = vmatmul.mubr.f32.gmra.mrb[0].mxu0 %v443
    %v511 = vpop.f32.mrb[0].mxu0
    %v512 = vadd.f32 0.0, %v511
    %v513 = vpop.f32.mrb[0].mxu0
    %514 = vdwg.mxu0
    %v516 = vrot.slane %v512, 6
    %v518 = vadd.f32 %v317, %v516
    %v519 = vxor.u32 %v518, 2147483648
    %v520 = vmul.f32 %v519, 1.442695
    %v521 = vpow.pop %v520
    %v522 = vadd.f32 %v521, 1.0
    %v523 = vrcp.pop %v522
    %v524 = vmul.f32 1.0, %v523
    %v525 = vtanh.pop %v518
    %v527 = vrot.slane %v435, 6
    %528 = vrot.lane.b32.xlu0 %v527, 32
    %v529 = vpop.permute.xlu0 %528
    %v531 = vmul.f32 %v524, %v529
    %533 = vrot.lane.b32.xlu0 %v525, 64
    %v534 = vpop.permute.xlu0 %533
    %v536 = vmul.f32 %v524, %v534
    %538 = vrot.lane.b32.xlu0 %v536, 32
    %v539 = vpop.permute.xlu0 %538
    %v541 = vadd.f32 %v531, %v539
    %v542 = vtanh.pop %v541
    %544 = vrot.lane.b32.xlu0 %v542, 64
    %v545 = vpop.permute.xlu0 %544
    %v547 = vmul.f32 %v524, %v545
    %v548 = vsub.f32 %v541, %v529
    %550 = vrot.lane.b32.xlu0 %v548, 96
    %v551 = vpop.permute.xlu0 %550
    %v553 = vmul.f32 %v329, %v551
    %v555 = vrot.slane %v553, 2
    %v557 = vadd.f32 %v435, %v555
    %v558 = vrot.slane %v441, 6
    %559 = vrot.lane.b32.xlu0 %v558, 96
    %v560 = vpop.permute.xlu0 %559
    %v562 = vsub.f32 %v547, %v560
    %564 = vrot.lane.b32.xlu0 %v562, 32
    %v565 = vpop.permute.xlu0 %564
    %v567 = vmul.f32 %v329, %v565
    %v569 = vrot.slane %v567, 2
    %v571 = vadd.f32 %v441, %v569
    %573 = vrot.lane.b32.xlu0 %v547, 32
    %v574 = vpop.permute.xlu0 %573
    %v576 = vmul.f32 %v329, %v574
    %v578 = vsel %vm331, %v571, 0
    %580 = vmatprep.subr.mxu0 0.0
    %581 = vmatpush1.msra.mxu0 %v325
    %582 = vmatprep.subr.mxu0 0.0
    %583 = vmatpush1.msra.mxu0 %v326
    %584 = vmatprep.subr.mxu0 0.0
    %585 = vmatpush1.msra.mxu0 %v327
    %586 = vmatprep.subr.mxu0 0.0
    %587 = vmatpush1.msra.mxu0 %v328
    %588 = vmatprep.subr.mxu0 0.0
    %589 = vmatpush1.msra.mxu0 0.0
    %590 = vmatprep.subr.mxu0 0.0
    %591 = vmatpush1.msra.mxu0 0.0
    %592 = vmatprep.subr.mxu0 0.0
    %593 = vmatpush1.msra.mxu0 0.0
    %594 = vmatprep.subr.mxu0 0.0
    %595 = vmatpush1.msra.mxu0 0.0
    %596 = vmatprep.subr.mxu0 0.0
    %597 = vmatpush1.msra.mxu0 0.0
    %598 = vmatprep.subr.mxu0 0.0
    %599 = vmatpush1.msra.mxu0 0.0
    %600 = vmatprep.subr.mxu0 0.0
    %601 = vmatpush1.msra.mxu0 0.0
    %602 = vmatprep.subr.mxu0 0.0
    %603 = vmatpush1.msra.mxu0 0.0
    %604 = vmatprep.subr.mxu0 0.0
    %605 = vmatpush1.msra.mxu0 0.0
    %606 = vmatprep.subr.mxu0 0.0
    %607 = vmatpush1.msra.mxu0 0.0
    %608 = vmatprep.subr.mxu0 0.0
    %609 = vmatpush1.msra.mxu0 0.0
    %610 = vmatprep.subr.mxu0 0.0
    %611 = vmatpush1.msra.mxu0 0.0
    %612 = vmatprep.subr.mxu0 0.0
    %613 = vmatpush1.msra.mxu0 0.0
    %614 = vmatprep.subr.mxu0 0.0
    %615 = vmatpush1.msra.mxu0 0.0
    %616 = vmatprep.subr.mxu0 0.0
    %617 = vmatpush1.msra.mxu0 0.0
    %618 = vmatprep.subr.mxu0 0.0
    %619 = vmatpush1.msra.mxu0 0.0
    %620 = vmatprep.subr.mxu0 0.0
    %621 = vmatpush1.msra.mxu0 0.0
    %622 = vmatprep.subr.mxu0 0.0
    %623 = vmatpush1.msra.mxu0 0.0
    %624 = vmatprep.subr.mxu0 0.0
    %625 = vmatpush1.msra.mxu0 0.0
    %626 = vmatprep.subr.mxu0 0.0
    %627 = vmatpush1.msra.mxu0 0.0
    %628 = vmatprep.subr.mxu0 0.0
    %629 = vmatpush1.msra.mxu0 0.0
    %630 = vmatprep.subr.mxu0 0.0
    %631 = vmatpush1.msra.mxu0 0.0
    %632 = vmatprep.subr.mxu0 0.0
    %633 = vmatpush1.msra.mxu0 0.0
    %634 = vmatprep.subr.mxu0 0.0
    %635 = vmatpush1.msra.mxu0 0.0
    %636 = vmatprep.subr.mxu0 0.0
    %637 = vmatpush1.msra.mxu0 0.0
    %638 = vmatprep.subr.mxu0 0.0
    %639 = vmatpush1.msra.mxu0 0.0
    %640 = vmatprep.subr.mxu0 0.0
    %641 = vmatpush1.msra.mxu0 0.0
    %642 = vmatprep.subr.mxu0 0.0
    %643 = vmatpush1.msra.mxu0 0.0
    %644 = vmatprep.mubr.f32.mxu0 0.0
    %645 = vmatmul.mubr.f32.gmra.mrb[0].mxu0 %v578
    %v646 = vpop.f32.mrb[0].mxu0
    %v647 = vadd.f32 0.0, %v646
    %v648 = vpop.f32.mrb[0].mxu0
    %649 = vdwg.mxu0
    %v651 = vrot.slane %v647, 4
    %v653 = vadd.f32 %v317, %v651
    %v654 = vxor.u32 %v653, 2147483648
    %v655 = vmul.f32 %v654, 1.442695
    %v656 = vpow.pop %v655
    %v657 = vadd.f32 %v656, 1.0
    %v658 = vrcp.pop %v657
    %v659 = vmul.f32 1.0, %v658
    %v660 = vtanh.pop %v653
    %v662 = vrot.slane %v557, 4
    %663 = vrot.lane.b32.xlu0 %v662, 32
    %v664 = vpop.permute.xlu0 %663
    %v666 = vmul.f32 %v659, %v664
    %668 = vrot.lane.b32.xlu0 %v660, 64
    %v669 = vpop.permute.xlu0 %668
    %v671 = vmul.f32 %v659, %v669
    %673 = vrot.lane.b32.xlu0 %v671, 32
    %v674 = vpop.permute.xlu0 %673
    %v676 = vadd.f32 %v666, %v674
    %v677 = vtanh.pop %v676
    %679 = vrot.lane.b32.xlu0 %v677, 64
    %v680 = vpop.permute.xlu0 %679
    %v682 = vmul.f32 %v659, %v680
    %v683 = vsub.f32 %v676, %v664
    %685 = vrot.lane.b32.xlu0 %v683, 96
    %v686 = vpop.permute.xlu0 %685
    %v688 = vmul.f32 %v329, %v686
    %v690 = vrot.slane %v688, 4
    %v692 = vadd.f32 %v557, %v690
    %v693 = vrot.slane %v571, 4
    %694 = vrot.lane.b32.xlu0 %v693, 96
    %v695 = vpop.permute.xlu0 %694
    %v697 = vsub.f32 %v682, %v695
    %699 = vrot.lane.b32.xlu0 %v697, 32
    %v700 = vpop.permute.xlu0 %699
    %v702 = vmul.f32 %v329, %v700
    %v704 = vrot.slane %v702, 4
    %v706 = vadd.f32 %v571, %v704
    %708 = vrot.lane.b32.xlu0 %v682, 32
    %v709 = vpop.permute.xlu0 %708
    %v711 = vmul.f32 %v329, %v709
    %v713 = vsel %vm331, %v706, 0
    %715 = vmatprep.subr.mxu0 0.0
    %716 = vmatpush1.msra.mxu0 %v325
    %717 = vmatprep.subr.mxu0 0.0
    %718 = vmatpush1.msra.mxu0 %v326
    %719 = vmatprep.subr.mxu0 0.0
    %720 = vmatpush1.msra.mxu0 %v327
    %721 = vmatprep.subr.mxu0 0.0
    %722 = vmatpush1.msra.mxu0 %v328
    %723 = vmatprep.subr.mxu0 0.0
    %724 = vmatpush1.msra.mxu0 0.0
    %725 = vmatprep.subr.mxu0 0.0
    %726 = vmatpush1.msra.mxu0 0.0
    %727 = vmatprep.subr.mxu0 0.0
    %728 = vmatpush1.msra.mxu0 0.0
    %729 = vmatprep.subr.mxu0 0.0
    %730 = vmatpush1.msra.mxu0 0.0
    %731 = vmatprep.subr.mxu0 0.0
    %732 = vmatpush1.msra.mxu0 0.0
    %733 = vmatprep.subr.mxu0 0.0
    %734 = vmatpush1.msra.mxu0 0.0
    %735 = vmatprep.subr.mxu0 0.0
    %736 = vmatpush1.msra.mxu0 0.0
    %737 = vmatprep.subr.mxu0 0.0
    %738 = vmatpush1.msra.mxu0 0.0
    %739 = vmatprep.subr.mxu0 0.0
    %740 = vmatpush1.msra.mxu0 0.0
    %741 = vmatprep.subr.mxu0 0.0
    %742 = vmatpush1.msra.mxu0 0.0
    %743 = vmatprep.subr.mxu0 0.0
    %744 = vmatpush1.msra.mxu0 0.0
    %745 = vmatprep.subr.mxu0 0.0
    %746 = vmatpush1.msra.mxu0 0.0
    %747 = vmatprep.subr.mxu0 0.0
    %748 = vmatpush1.msra.mxu0 0.0
    %749 = vmatprep.subr.mxu0 0.0
    %750 = vmatpush1.msra.mxu0 0.0
    %751 = vmatprep.subr.mxu0 0.0
    %752 = vmatpush1.msra.mxu0 0.0
    %753 = vmatprep.subr.mxu0 0.0
    %754 = vmatpush1.msra.mxu0 0.0
    %755 = vmatprep.subr.mxu0 0.0
    %756 = vmatpush1.msra.mxu0 0.0
    %757 = vmatprep.subr.mxu0 0.0
    %758 = vmatpush1.msra.mxu0 0.0
    %759 = vmatprep.subr.mxu0 0.0
    %760 = vmatpush1.msra.mxu0 0.0
    %761 = vmatprep.subr.mxu0 0.0
    %762 = vmatpush1.msra.mxu0 0.0
    %763 = vmatprep.subr.mxu0 0.0
    %764 = vmatpush1.msra.mxu0 0.0
    %765 = vmatprep.subr.mxu0 0.0
    %766 = vmatpush1.msra.mxu0 0.0
    %767 = vmatprep.subr.mxu0 0.0
    %768 = vmatpush1.msra.mxu0 0.0
    %769 = vmatprep.subr.mxu0 0.0
    %770 = vmatpush1.msra.mxu0 0.0
    %771 = vmatprep.subr.mxu0 0.0
    %772 = vmatpush1.msra.mxu0 0.0
    %773 = vmatprep.subr.mxu0 0.0
    %774 = vmatpush1.msra.mxu0 0.0
    %775 = vmatprep.subr.mxu0 0.0
    %776 = vmatpush1.msra.mxu0 0.0
    %777 = vmatprep.subr.mxu0 0.0
    %778 = vmatpush1.msra.mxu0 0.0
    %779 = vmatprep.mubr.f32.mxu0 0.0
    %780 = vmatmul.mubr.f32.gmra.mrb[0].mxu0 %v713
    %v781 = vpop.f32.mrb[0].mxu0
    %v782 = vadd.f32 0.0, %v781
    %v783 = vpop.f32.mrb[0].mxu0
    %784 = vdwg.mxu0
    %v786 = vrot.slane %v782, 2
    %v788 = vadd.f32 %v317, %v786
    %v789 = vxor.u32 %v788, 2147483648
    %v790 = vmul.f32 %v789, 1.442695
    %v791 = vpow.pop %v790
    %v792 = vadd.f32 %v791, 1.0
    %v793 = vrcp.pop %v792
    %v794 = vmul.f32 1.0, %v793
    %v795 = vtanh.pop %v788
    %v797 = vrot.slane %v692, 2
    %798 = vrot.lane.b32.xlu0 %v797, 32
    %v799 = vpop.permute.xlu0 %798
    %v801 = vmul.f32 %v794, %v799
    %803 = vrot.lane.b32.xlu0 %v795, 64
    %v804 = vpop.permute.xlu0 %803
    %v806 = vmul.f32 %v794, %v804
    %808 = vrot.lane.b32.xlu0 %v806, 32
    %v809 = vpop.permute.xlu0 %808
    %v811 = vadd.f32 %v801, %v809
    %v812 = vtanh.pop %v811
    %814 = vrot.lane.b32.xlu0 %v812, 64
    %v815 = vpop.permute.xlu0 %814
    %v817 = vmul.f32 %v794, %v815
    %v818 = vsub.f32 %v811, %v799
    %820 = vrot.lane.b32.xlu0 %v818, 96
    %v821 = vpop.permute.xlu0 %820
    %v823 = vmul.f32 %v329, %v821
    %v825 = vrot.slane %v823, 6
    %v827 = vadd.f32 %v692, %v825
    %v828 = vrot.slane %v706, 2
    %829 = vrot.lane.b32.xlu0 %v828, 96
    %v830 = vpop.permute.xlu0 %829
    %v832 = vsub.f32 %v817, %v830
    %834 = vrot.lane.b32.xlu0 %v832, 32
    %v835 = vpop.permute.xlu0 %834
    %v837 = vmul.f32 %v329, %v835
    %v839 = vrot.slane %v837, 6
    %v841 = vadd.f32 %v706, %v839
    %843 = vrot.lane.b32.xlu0 %v817, 32
    %v844 = vpop.permute.xlu0 %843
    %v846 = vmul.f32 %v329, %v844
    %v848 = vsel %vm331, %v841, 0
    %850 = vmatprep.subr.mxu0 0.0
    %851 = vmatpush1.msra.mxu0 %v325
    %852 = vmatprep.subr.mxu0 0.0
    %853 = vmatpush1.msra.mxu0 %v326
    %854 = vmatprep.subr.mxu0 0.0
    %855 = vmatpush1.msra.mxu0 %v327
    %856 = vmatprep.subr.mxu0 0.0
    %857 = vmatpush1.msra.mxu0 %v328
    %858 = vmatprep.subr.mxu0 0.0
    %859 = vmatpush1.msra.mxu0 0.0
    %860 = vmatprep.subr.mxu0 0.0
    %861 = vmatpush1.msra.mxu0 0.0
    %862 = vmatprep.subr.mxu0 0.0
    %863 = vmatpush1.msra.mxu0 0.0
    %864 = vmatprep.subr.mxu0 0.0
    %865 = vmatpush1.msra.mxu0 0.0
    %866 = vmatprep.subr.mxu0 0.0
    %867 = vmatpush1.msra.mxu0 0.0
    %868 = vmatprep.subr.mxu0 0.0
    %869 = vmatpush1.msra.mxu0 0.0
    %870 = vmatprep.subr.mxu0 0.0
    %871 = vmatpush1.msra.mxu0 0.0
    %872 = vmatprep.subr.mxu0 0.0
    %873 = vmatpush1.msra.mxu0 0.0
    %874 = vmatprep.subr.mxu0 0.0
    %875 = vmatpush1.msra.mxu0 0.0
    %876 = vmatprep.subr.mxu0 0.0
    %877 = vmatpush1.msra.mxu0 0.0
    %878 = vmatprep.subr.mxu0 0.0
    %879 = vmatpush1.msra.mxu0 0.0
    %880 = vmatprep.subr.mxu0 0.0
    %881 = vmatpush1.msra.mxu0 0.0
    %882 = vmatprep.subr.mxu0 0.0
    %883 = vmatpush1.msra.mxu0 0.0
    %884 = vmatprep.subr.mxu0 0.0
    %885 = vmatpush1.msra.mxu0 0.0
    %886 = vmatprep.subr.mxu0 0.0
    %887 = vmatpush1.msra.mxu0 0.0
    %888 = vmatprep.subr.mxu0 0.0
    %889 = vmatpush1.msra.mxu0 0.0
    %890 = vmatprep.subr.mxu0 0.0
    %891 = vmatpush1.msra.mxu0 0.0
    %892 = vmatprep.subr.mxu0 0.0
    %893 = vmatpush1.msra.mxu0 0.0
    %894 = vmatprep.subr.mxu0 0.0
    %895 = vmatpush1.msra.mxu0 0.0
    %896 = vmatprep.subr.mxu0 0.0
    %897 = vmatpush1.msra.mxu0 0.0
    %898 = vmatprep.subr.mxu0 0.0
    %899 = vmatpush1.msra.mxu0 0.0
    %900 = vmatprep.subr.mxu0 0.0
    %901 = vmatpush1.msra.mxu0 0.0
    %902 = vmatprep.subr.mxu0 0.0
    %903 = vmatpush1.msra.mxu0 0.0
    %904 = vmatprep.subr.mxu0 0.0
    %905 = vmatpush1.msra.mxu0 0.0
    %906 = vmatprep.subr.mxu0 0.0
    %907 = vmatpush1.msra.mxu0 0.0
    %908 = vmatprep.subr.mxu0 0.0
    %909 = vmatpush1.msra.mxu0 0.0
    %910 = vmatprep.subr.mxu0 0.0
    %911 = vmatpush1.msra.mxu0 0.0
    %912 = vmatprep.subr.mxu0 0.0
    %913 = vmatpush1.msra.mxu0 0.0
    %914 = vmatprep.mubr.f32.mxu0 0.0
    %915 = vmatmul.mubr.f32.gmra.mrb[0].mxu0 %v848
    %v916 = vpop.f32.mrb[0].mxu0
    %v917 = vadd.f32 0.0, %v916
    %v918 = vpop.f32.mrb[0].mxu0
    %919 = vdwg.mxu0
    %v920 = vadd.f32 %v322, %v917
    %v921 = vxor.u32 %v920, 2147483648
    %v922 = vmul.f32 %v921, 1.442695
    %v923 = vpow.pop %v922
    %v924 = vadd.f32 %v923, 1.0
    %v925 = vrcp.pop %v924
    %v926 = vmul.f32 1.0, %v925
    %v927 = vtanh.pop %v920
    %929 = vrot.lane.b32.xlu0 %v827, 32
    %v930 = vpop.permute.xlu0 %929
    %v932 = vmul.f32 %v926, %v930
    %934 = vrot.lane.b32.xlu0 %v927, 64
    %v935 = vpop.permute.xlu0 %934
    %v937 = vmul.f32 %v926, %v935
    %939 = vrot.lane.b32.xlu0 %v937, 32
    %v940 = vpop.permute.xlu0 %939
    %v942 = vadd.f32 %v932, %v940
    %v943 = vtanh.pop %v942
    %945 = vrot.lane.b32.xlu0 %v943, 64
    %v946 = vpop.permute.xlu0 %945
    %v948 = vmul.f32 %v926, %v946
    %v949 = vsub.f32 %v942, %v930
    %951 = vrot.lane.b32.xlu0 %v949, 96
    %v952 = vpop.permute.xlu0 %951
    %v954 = vmul.f32 %v330, %v952
    %v955 = vadd.f32 %v827, %v954
    %956 = vrot.lane.b32.xlu0 %v841, 96
    %v957 = vpop.permute.xlu0 %956
    %v959 = vsub.f32 %v948, %v957
    %961 = vrot.lane.b32.xlu0 %v959, 32
    %v962 = vpop.permute.xlu0 %961
    %v964 = vmul.f32 %v330, %v962
    %v965 = vadd.f32 %v841, %v964
    %967 = vrot.lane.b32.xlu0 %v948, 32
    %v968 = vpop.permute.xlu0 %967
    %v970 = vmul.f32 %v330, %v968
    %v972 = vsel %vm331, %v965, 0
    %974 = vmatprep.subr.mxu0 0.0
    %975 = vmatpush1.msra.mxu0 %v325
    %976 = vmatprep.subr.mxu0 0.0
    %977 = vmatpush1.msra.mxu0 %v326
    %978 = vmatprep.subr.mxu0 0.0
    %979 = vmatpush1.msra.mxu0 %v327
    %980 = vmatprep.subr.mxu0 0.0
    %981 = vmatpush1.msra.mxu0 %v328
    %982 = vmatprep.subr.mxu0 0.0
    %983 = vmatpush1.msra.mxu0 0.0
    %984 = vmatprep.subr.mxu0 0.0
    %985 = vmatpush1.msra.mxu0 0.0
    %986 = vmatprep.subr.mxu0 0.0
    %987 = vmatpush1.msra.mxu0 0.0
    %988 = vmatprep.subr.mxu0 0.0
    %989 = vmatpush1.msra.mxu0 0.0
    %990 = vmatprep.subr.mxu0 0.0
    %991 = vmatpush1.msra.mxu0 0.0
    %992 = vmatprep.subr.mxu0 0.0
    %993 = vmatpush1.msra.mxu0 0.0
    %994 = vmatprep.subr.mxu0 0.0
    %995 = vmatpush1.msra.mxu0 0.0
    %996 = vmatprep.subr.mxu0 0.0
    %997 = vmatpush1.msra.mxu0 0.0
    %998 = vmatprep.subr.mxu0 0.0
    %999 = vmatpush1.msra.mxu0 0.0
    %1000 = vmatprep.subr.mxu0 0.0
    %1001 = vmatpush1.msra.mxu0 0.0
    %1002 = vmatprep.subr.mxu0 0.0
    %1003 = vmatpush1.msra.mxu0 0.0
    %1004 = vmatprep.subr.mxu0 0.0
    %1005 = vmatpush1.msra.mxu0 0.0
    %1006 = vmatprep.subr.mxu0 0.0
    %1007 = vmatpush1.msra.mxu0 0.0
    %1008 = vmatprep.subr.mxu0 0.0
    %1009 = vmatpush1.msra.mxu0 0.0
    %1010 = vmatprep.subr.mxu0 0.0
    %1011 = vmatpush1.msra.mxu0 0.0
    %1012 = vmatprep.subr.mxu0 0.0
    %1013 = vmatpush1.msra.mxu0 0.0
    %1014 = vmatprep.subr.mxu0 0.0
    %1015 = vmatpush1.msra.mxu0 0.0
    %1016 = vmatprep.subr.mxu0 0.0
    %1017 = vmatpush1.msra.mxu0 0.0
    %1018 = vmatprep.subr.mxu0 0.0
    %1019 = vmatpush1.msra.mxu0 0.0
    %1020 = vmatprep.subr.mxu0 0.0
    %1021 = vmatpush1.msra.mxu0 0.0
    %1022 = vmatprep.subr.mxu0 0.0
    %1023 = vmatpush1.msra.mxu0 0.0
    %1024 = vmatprep.subr.mxu0 0.0
    %1025 = vmatpush1.msra.mxu0 0.0
    %1026 = vmatprep.subr.mxu0 0.0
    %1027 = vmatpush1.msra.mxu0 0.0
    %1028 = vmatprep.subr.mxu0 0.0
    %1029 = vmatpush1.msra.mxu0 0.0
    %1030 = vmatprep.subr.mxu0 0.0
    %1031 = vmatpush1.msra.mxu0 0.0
    %1032 = vmatprep.subr.mxu0 0.0
    %1033 = vmatpush1.msra.mxu0 0.0
    %1034 = vmatprep.subr.mxu0 0.0
    %1035 = vmatpush1.msra.mxu0 0.0
    %1036 = vmatprep.subr.mxu0 0.0
    %1037 = vmatpush1.msra.mxu0 0.0
    %1038 = vmatprep.mubr.f32.mxu0 0.0
    %1039 = vmatmul.mubr.f32.gmra.mrb[0].mxu0 %v972
    %v1040 = vpop.f32.mrb[0].mxu0
    %v1041 = vadd.f32 0.0, %v1040
    %v1042 = vpop.f32.mrb[0].mxu0
    %1043 = vdwg.mxu0
    %v1045 = vrot.slane %v1041, 6
    %v1047 = vadd.f32 %v322, %v1045
    %v1048 = vxor.u32 %v1047, 2147483648
    %v1049 = vmul.f32 %v1048, 1.442695
    %v1050 = vpow.pop %v1049
    %v1051 = vadd.f32 %v1050, 1.0
    %v1052 = vrcp.pop %v1051
    %v1053 = vmul.f32 1.0, %v1052
    %v1054 = vtanh.pop %v1047
    %v1056 = vrot.slane %v955, 6
    %1057 = vrot.lane.b32.xlu0 %v1056, 32
    %v1058 = vpop.permute.xlu0 %1057
    %v1060 = vmul.f32 %v1053, %v1058
    %1062 = vrot.lane.b32.xlu0 %v1054, 64
    %v1063 = vpop.permute.xlu0 %1062
    %v1065 = vmul.f32 %v1053, %v1063
    %1067 = vrot.lane.b32.xlu0 %v1065, 32
    %v1068 = vpop.permute.xlu0 %1067
    %v1070 = vadd.f32 %v1060, %v1068
    %v1071 = vtanh.pop %v1070
    %1073 = vrot.lane.b32.xlu0 %v1071, 64
    %v1074 = vpop.permute.xlu0 %1073
    %v1076 = vmul.f32 %v1053, %v1074
    %v1077 = vsub.f32 %v1070, %v1058
    %1079 = vrot.lane.b32.xlu0 %v1077, 96
    %v1080 = vpop.permute.xlu0 %1079
    %v1082 = vmul.f32 %v330, %v1080
    %v1084 = vrot.slane %v1082, 2
    %v1086 = vadd.f32 %v955, %v1084
    %v1087 = vrot.slane %v965, 6
    %1088 = vrot.lane.b32.xlu0 %v1087, 96
    %v1089 = vpop.permute.xlu0 %1088
    %v1091 = vsub.f32 %v1076, %v1089
    %1093 = vrot.lane.b32.xlu0 %v1091, 32
    %v1094 = vpop.permute.xlu0 %1093
    %v1096 = vmul.f32 %v330, %v1094
    %v1098 = vrot.slane %v1096, 2
    %v1100 = vadd.f32 %v965, %v1098
    %1102 = vrot.lane.b32.xlu0 %v1076, 32
    %v1103 = vpop.permute.xlu0 %1102
    %v1105 = vmul.f32 %v330, %v1103
    %v1107 = vsel %vm331, %v1100, 0
    %1109 = vmatprep.subr.mxu0 0.0
    %1110 = vmatpush1.msra.mxu0 %v325
    %1111 = vmatprep.subr.mxu0 0.0
    %1112 = vmatpush1.msra.mxu0 %v326
    %1113 = vmatprep.subr.mxu0 0.0
    %1114 = vmatpush1.msra.mxu0 %v327
    %1115 = vmatprep.subr.mxu0 0.0
    %1116 = vmatpush1.msra.mxu0 %v328
    %1117 = vmatprep.subr.mxu0 0.0
    %1118 = vmatpush1.msra.mxu0 0.0
    %1119 = vmatprep.subr.mxu0 0.0
    %1120 = vmatpush1.msra.mxu0 0.0
    %1121 = vmatprep.subr.mxu0 0.0
    %1122 = vmatpush1.msra.mxu0 0.0
    %1123 = vmatprep.subr.mxu0 0.0
    %1124 = vmatpush1.msra.mxu0 0.0
    %1125 = vmatprep.subr.mxu0 0.0
    %1126 = vmatpush1.msra.mxu0 0.0
    %1127 = vmatprep.subr.mxu0 0.0
    %1128 = vmatpush1.msra.mxu0 0.0
    %1129 = vmatprep.subr.mxu0 0.0
    %1130 = vmatpush1.msra.mxu0 0.0
    %1131 = vmatprep.subr.mxu0 0.0
    %1132 = vmatpush1.msra.mxu0 0.0
    %1133 = vmatprep.subr.mxu0 0.0
    %1134 = vmatpush1.msra.mxu0 0.0
    %1135 = vmatprep.subr.mxu0 0.0
    %1136 = vmatpush1.msra.mxu0 0.0
    %1137 = vmatprep.subr.mxu0 0.0
    %1138 = vmatpush1.msra.mxu0 0.0
    %1139 = vmatprep.subr.mxu0 0.0
    %1140 = vmatpush1.msra.mxu0 0.0
    %1141 = vmatprep.subr.mxu0 0.0
    %1142 = vmatpush1.msra.mxu0 0.0
    %1143 = vmatprep.subr.mxu0 0.0
    %1144 = vmatpush1.msra.mxu0 0.0
    %1145 = vmatprep.subr.mxu0 0.0
    %1146 = vmatpush1.msra.mxu0 0.0
    %1147 = vmatprep.subr.mxu0 0.0
    %1148 = vmatpush1.msra.mxu0 0.0
    %1149 = vmatprep.subr.mxu0 0.0
    %1150 = vmatpush1.msra.mxu0 0.0
    %1151 = vmatprep.subr.mxu0 0.0
    %1152 = vmatpush1.msra.mxu0 0.0
    %1153 = vmatprep.subr.mxu0 0.0
    %1154 = vmatpush1.msra.mxu0 0.0
    %1155 = vmatprep.subr.mxu0 0.0
    %1156 = vmatpush1.msra.mxu0 0.0
    %1157 = vmatprep.subr.mxu0 0.0
    %1158 = vmatpush1.msra.mxu0 0.0
    %1159 = vmatprep.subr.mxu0 0.0
    %1160 = vmatpush1.msra.mxu0 0.0
    %1161 = vmatprep.subr.mxu0 0.0
    %1162 = vmatpush1.msra.mxu0 0.0
    %1163 = vmatprep.subr.mxu0 0.0
    %1164 = vmatpush1.msra.mxu0 0.0
    %1165 = vmatprep.subr.mxu0 0.0
    %1166 = vmatpush1.msra.mxu0 0.0
    %1167 = vmatprep.subr.mxu0 0.0
    %1168 = vmatpush1.msra.mxu0 0.0
    %1169 = vmatprep.subr.mxu0 0.0
    %1170 = vmatpush1.msra.mxu0 0.0
    %1171 = vmatprep.subr.mxu0 0.0
    %1172 = vmatpush1.msra.mxu0 0.0
    %1173 = vmatprep.mubr.f32.mxu0 0.0
    %1174 = vmatmul.mubr.f32.gmra.mrb[0].mxu0 %v1107
    %v1175 = vpop.f32.mrb[0].mxu0
    %v1176 = vadd.f32 0.0, %v1175
    %v1177 = vpop.f32.mrb[0].mxu0
    %1178 = vdwg.mxu0
    %v1180 = vrot.slane %v1176, 4
    %v1182 = vadd.f32 %v322, %v1180
    %v1183 = vxor.u32 %v1182, 2147483648
    %v1184 = vmul.f32 %v1183, 1.442695
    %v1185 = vpow.pop %v1184
    %v1186 = vadd.f32 %v1185, 1.0
    %v1187 = vrcp.pop %v1186
    %v1188 = vmul.f32 1.0, %v1187
    %v1189 = vtanh.pop %v1182
    %v1191 = vrot.slane %v1086, 4
    %1192 = vrot.lane.b32.xlu0 %v1191, 32
    %v1193 = vpop.permute.xlu0 %1192
    %v1195 = vmul.f32 %v1188, %v1193
    %1197 = vrot.lane.b32.xlu0 %v1189, 64
    %v1198 = vpop.permute.xlu0 %1197
    %v1200 = vmul.f32 %v1188, %v1198
    %1202 = vrot.lane.b32.xlu0 %v1200, 32
    %v1203 = vpop.permute.xlu0 %1202
    %v1205 = vadd.f32 %v1195, %v1203
    %v1206 = vtanh.pop %v1205
    %1208 = vrot.lane.b32.xlu0 %v1206, 64
    %v1209 = vpop.permute.xlu0 %1208
    %v1211 = vmul.f32 %v1188, %v1209
    %v1212 = vsub.f32 %v1205, %v1193
    %1214 = vrot.lane.b32.xlu0 %v1212, 96
    %v1215 = vpop.permute.xlu0 %1214
    %v1217 = vmul.f32 %v330, %v1215
    %v1219 = vrot.slane %v1217, 4
    %v1221 = vadd.f32 %v1086, %v1219
    %v1222 = vrot.slane %v1100, 4
    %1223 = vrot.lane.b32.xlu0 %v1222, 96
    %v1224 = vpop.permute.xlu0 %1223
    %v1226 = vsub.f32 %v1211, %v1224
    %1228 = vrot.lane.b32.xlu0 %v1226, 32
    %v1229 = vpop.permute.xlu0 %1228
    %v1231 = vmul.f32 %v330, %v1229
    %v1233 = vrot.slane %v1231, 4
    %v1235 = vadd.f32 %v1100, %v1233
    %1237 = vrot.lane.b32.xlu0 %v1211, 32
    %v1238 = vpop.permute.xlu0 %1237
    %v1240 = vmul.f32 %v330, %v1238
    %v1242 = vsel %vm331, %v1235, 0
    %1244 = vmatprep.subr.mxu0 0.0
    %1245 = vmatpush1.msra.mxu0 %v325
    %1246 = vmatprep.subr.mxu0 0.0
    %1247 = vmatpush1.msra.mxu0 %v326
    %1248 = vmatprep.subr.mxu0 0.0
    %1249 = vmatpush1.msra.mxu0 %v327
    %1250 = vmatprep.subr.mxu0 0.0
    %1251 = vmatpush1.msra.mxu0 %v328
    %1252 = vmatprep.subr.mxu0 0.0
    %1253 = vmatpush1.msra.mxu0 0.0
    %1254 = vmatprep.subr.mxu0 0.0
    %1255 = vmatpush1.msra.mxu0 0.0
    %1256 = vmatprep.subr.mxu0 0.0
    %1257 = vmatpush1.msra.mxu0 0.0
    %1258 = vmatprep.subr.mxu0 0.0
    %1259 = vmatpush1.msra.mxu0 0.0
    %1260 = vmatprep.subr.mxu0 0.0
    %1261 = vmatpush1.msra.mxu0 0.0
    %1262 = vmatprep.subr.mxu0 0.0
    %1263 = vmatpush1.msra.mxu0 0.0
    %1264 = vmatprep.subr.mxu0 0.0
    %1265 = vmatpush1.msra.mxu0 0.0
    %1266 = vmatprep.subr.mxu0 0.0
    %1267 = vmatpush1.msra.mxu0 0.0
    %1268 = vmatprep.subr.mxu0 0.0
    %1269 = vmatpush1.msra.mxu0 0.0
    %1270 = vmatprep.subr.mxu0 0.0
    %1271 = vmatpush1.msra.mxu0 0.0
    %1272 = vmatprep.subr.mxu0 0.0
    %1273 = vmatpush1.msra.mxu0 0.0
    %1274 = vmatprep.subr.mxu0 0.0
    %1275 = vmatpush1.msra.mxu0 0.0
    %1276 = vmatprep.subr.mxu0 0.0
    %1277 = vmatpush1.msra.mxu0 0.0
    %1278 = vmatprep.subr.mxu0 0.0
    %1279 = vmatpush1.msra.mxu0 0.0
    %1280 = vmatprep.subr.mxu0 0.0
    %1281 = vmatpush1.msra.mxu0 0.0
    %1282 = vmatprep.subr.mxu0 0.0
    %1283 = vmatpush1.msra.mxu0 0.0
    %1284 = vmatprep.subr.mxu0 0.0
    %1285 = vmatpush1.msra.mxu0 0.0
    %1286 = vmatprep.subr.mxu0 0.0
    %1287 = vmatpush1.msra.mxu0 0.0
    %1288 = vmatprep.subr.mxu0 0.0
    %1289 = vmatpush1.msra.mxu0 0.0
    %1290 = vmatprep.subr.mxu0 0.0
    %1291 = vmatpush1.msra.mxu0 0.0
    %1292 = vmatprep.subr.mxu0 0.0
    %1293 = vmatpush1.msra.mxu0 0.0
    %1294 = vmatprep.subr.mxu0 0.0
    %1295 = vmatpush1.msra.mxu0 0.0
    %1296 = vmatprep.subr.mxu0 0.0
    %1297 = vmatpush1.msra.mxu0 0.0
    %1298 = vmatprep.subr.mxu0 0.0
    %1299 = vmatpush1.msra.mxu0 0.0
    %1300 = vmatprep.subr.mxu0 0.0
    %1301 = vmatpush1.msra.mxu0 0.0
    %1302 = vmatprep.subr.mxu0 0.0
    %1303 = vmatpush1.msra.mxu0 0.0
    %1304 = vmatprep.subr.mxu0 0.0
    %1305 = vmatpush1.msra.mxu0 0.0
    %1306 = vmatprep.subr.mxu0 0.0
    %1307 = vmatpush1.msra.mxu0 0.0
    %1308 = vmatprep.mubr.f32.mxu0 0.0
    %1309 = vmatmul.mubr.f32.gmra.mrb[0].mxu0 %v1242
    %v1310 = vpop.f32.mrb[0].mxu0
    %v1311 = vadd.f32 0.0, %v1310
    %v1312 = vpop.f32.mrb[0].mxu0
    %1313 = vdwg.mxu0
    %v1315 = vrot.slane %v1311, 2
    %v1317 = vadd.f32 %v322, %v1315
    %v1318 = vxor.u32 %v1317, 2147483648
    %v1319 = vmul.f32 %v1318, 1.442695
    %v1320 = vpow.pop %v1319
    %v1321 = vadd.f32 %v1320, 1.0
    %v1322 = vrcp.pop %v1321
    %v1323 = vmul.f32 1.0, %v1322
    %v1324 = vtanh.pop %v1317
    %v1326 = vrot.slane %v1221, 2
    %1327 = vrot.lane.b32.xlu0 %v1326, 32
    %v1328 = vpop.permute.xlu0 %1327
    %v1330 = vmul.f32 %v1323, %v1328
    %1332 = vrot.lane.b32.xlu0 %v1324, 64
    %v1333 = vpop.permute.xlu0 %1332
    %v1335 = vmul.f32 %v1323, %v1333
    %1337 = vrot.lane.b32.xlu0 %v1335, 32
    %v1338 = vpop.permute.xlu0 %1337
    %v1340 = vadd.f32 %v1330, %v1338
    %v1341 = vtanh.pop %v1340
    %1343 = vrot.lane.b32.xlu0 %v1341, 64
    %v1344 = vpop.permute.xlu0 %1343
    %v1346 = vmul.f32 %v1323, %v1344
    %v1347 = vsub.f32 %v1340, %v1328
    %1349 = vrot.lane.b32.xlu0 %v1347, 96
    %v1350 = vpop.permute.xlu0 %1349
    %v1352 = vmul.f32 %v330, %v1350
    %v1354 = vrot.slane %v1352, 6
    %v1356 = vadd.f32 %v1221, %v1354
    %1358 = vrot.lane.b32.xlu0 %v1346, 32
    %v1359 = vpop.permute.xlu0 %1358
    %v1361 = vmul.f32 %v330, %v1359
    %v1363 = vrot.slane %v576, 2
    %1364 = vrot.lane.b32.xlu0 %v1363, 32
    %v1365 = vpop.permute.xlu0 %1364
    %v1368 = vrot.slane %v711, 4
    %1369 = vrot.lane.b32.xlu0 %v1368, 64
    %v1370 = vpop.permute.xlu0 %1369
    %v1373 = vrot.slane %v846, 6
    %1374 = vrot.lane.b32.xlu0 %v1373, 96
    %v1375 = vpop.permute.xlu0 %1374
    %v1378 = vrot.slane %v1105, 2
    %1379 = vrot.lane.b32.xlu0 %v1378, 32
    %v1380 = vpop.permute.xlu0 %1379
    %v1383 = vrot.slane %v1240, 4
    %1384 = vrot.lane.b32.xlu0 %v1383, 64
    %v1385 = vpop.permute.xlu0 %1384
    %v1388 = vrot.slane %v1361, 6
    %1389 = vrot.lane.b32.xlu0 %v1388, 96
    %v1390 = vpop.permute.xlu0 %1389
    %v1392 = vsel %vm331, %v440, %v1365
    %vm1393 = vcmask 523264
    %v1394 = vsel %vm1393, %v1392, %v1370
    %vm1395 = vcmask 785408
    %v1396 = vsel %vm1395, %v1394, %v1375
    %v1397 = vsel %vm331, %v970, %v1380
    %v1398 = vsel %vm1393, %v1397, %v1385
    %v1399 = vsel %vm1395, %v1398, %v1390
    %v1402 = vcombine.low %v1396, %v1399
    %v1404 = vunpack.c.l.s4 1983009808
    %v1405 = vunpack.c.0.s8 %v1404
    %v1406 = vlaneseq
    %v1407 = vshrl.u32 %v1406, 7
    %v1408 = vsub.s32 %v1405, %v1407
    %v1409 = vrot.slane %v1402, %v1408
    %1411 = vst [vmem:[#allocation10] sm:$0xf] %v1409
    %vm1412 = vcmask 254976
    %1413 = vst.msk [vmem:[#allocation11] sm:$0x3] %vm1412, %v1356
    // Predicated region
    $region46: #{tpu_custom_call.1} parent=1 // pred_check
      _
    $region47: #{tpu_custom_call.1} parent=1 // pred_check_branch
      %1415 = sbr.rel (0) target = $region49
    $region48: #{tpu_custom_call.1} parent=1 // pred_region
      %s1417 = ssub.s32 64, 64
      %1418 = vsyncadd [#allocation4], %s1417
      %s1420 = sshll.u32 [#allocation10], 4
      %s1421 = int_to_ptr.vmem [resolvable:$true] %s1420
      %1423 = dma.vmem_to_hbm [thread:$0]  %s1421, 64, %s7, [#allocation4]
    $region49: #{tpu_custom_call.1} parent=1 // pred_fallthru
      _
    // Predicated region
    $region50: #{tpu_custom_call.1} parent=1 // pred_check
      _
    $region51: #{tpu_custom_call.1} parent=1 // pred_check_branch
      %1425 = sbr.rel (0) target = $region53
    $region52: #{tpu_custom_call.1} parent=1 // pred_region
      %s1427 = ssub.s32 32, 32
      %1428 = vsyncadd [#allocation12], %s1427
      %s1430 = sshll.u32 [#allocation11], 4
      %s1431 = int_to_ptr.vmem [resolvable:$true] %s1430
      %1433 = dma.vmem_to_hbm [thread:$0]  %s1431, 32, %s8, [#allocation12]
    $region53: #{tpu_custom_call.1} parent=1 // pred_fallthru
      _
    // Predicated region
    $region54: #{tpu_custom_call.1} parent=1 // pred_check
      _
    $region55: #{tpu_custom_call.1} parent=1 // pred_check_branch
      %1435 = sbr.rel (0) target = $region57
    $region56: #{tpu_custom_call.1} parent=1 // pred_region
      %1436 = dma.done [#allocation4], 64
    $region57: #{tpu_custom_call.1} parent=1 // pred_fallthru
      _
    // Predicated region
    $region58: #{tpu_custom_call.1} parent=1 // pred_check
      _
    $region59: #{tpu_custom_call.1} parent=1 // pred_check_branch
      %1438 = sbr.rel (0) target = $region61
    $region60: #{tpu_custom_call.1} parent=1 // pred_region
      %1439 = dma.done [#allocation12], 32
    $region61: #{tpu_custom_call.1} parent=1 // pred_fallthru
      _
    %1440 = vsyncpa [#allocation3], 1
    %1441 = vsyncpa [#allocation6], 1
    %1442 = vsyncpa [#allocation9], 1
    %1443 = vsyncpa [#allocation4], 1
    %1444 = vsyncpa [#allocation12], 1

</llo_original>
